<compile_context>
chip_gen: v5e
topology: v5e:2x2
jax: 0.10.0
libtpu: 0.0.40
codegen_flags: <defaults>
</compile_context>

<pallas_src>
import functools

import jax
import jax.numpy as jnp
from jax.experimental import pallas as pl
from jax.experimental.pallas import tpu as pltpu

EMB_DIM = 128          # emb_dim (small stand-in for 300; pad to 384 for real model)
NUM_LAYER = 5          # num_layer
NUM_TASKS = 8          # num_tasks
BN_EPS = 1e-5
ATOM_VOCABS = (10, 5)  # 2 categorical atom features
BOND_VOCABS = (6, 4)   # 2 categorical bond features
ONE_PLUS_EPS = 1.0     # GINConv eps initialized to 0 (baked at trace time)


# -----------------------------------------------------------------------------
# Fused Pallas kernel: the whole GIN + virtual-node stack + pooling + head.
# Grid = (NUM_LAYER,); h and vn are VMEM-resident scratch across all layers.
# -----------------------------------------------------------------------------
def gnn_stack_kernel(h0_ref, gmat_ref, smat_ref, bnb_ref, bgn_ref, invc_ref,
                     eemb_ref, w1_ref, b1_ref, w2_ref, b2_ref,
                     vw1_ref, vb1_ref, vw2_ref, vb2_ref, pw_ref, pb_ref,
                     pred_ref, h_s, vn_s):
    layer = pl.program_id(0)
    last = pl.num_programs(0) - 1

    @pl.when(layer == 0)
    def _init():
        h_s[...] = h0_ref[...].astype(jnp.float32)     # atom-encoder output
        vn_s[...] = jnp.zeros_like(vn_s)               # virtualnode init = 0
        pred_ref[...] = jnp.zeros_like(pred_ref)

    # --- virtual-node broadcast:  h_in = h + onehot_b @ vn
    h_in = h_s[...] + jnp.dot(bnb_ref[...], vn_s[...].astype(jnp.bfloat16),
                              preferred_element_type=jnp.float32)
    h_in_bf = h_in.astype(jnp.bfloat16)

    # --- GIN message passing (bf16 one-hot gather/scatter, f32 accumulation)
    # TODO(synk): swap for scalar-prefetch index gather + segment-sum at scale.
    x_src = jnp.dot(gmat_ref[...], h_in_bf, preferred_element_type=jnp.float32)
    msg = jnp.maximum(x_src + eemb_ref[0].astype(jnp.float32), 0.0)
    aggr = jnp.dot(smat_ref[...], msg.astype(jnp.bfloat16),
                   preferred_element_type=jnp.float32)
    z = ONE_PLUS_EPS * h_in + aggr

    # --- GIN MLP (BN folded into w1/b1) + post-conv BN folded into w2/b2
    t = jnp.dot(z.astype(jnp.bfloat16), w1_ref[0],
                preferred_element_type=jnp.float32) + b1_ref[0]
    t = jnp.maximum(t, 0.0)
    y = jnp.dot(t.astype(jnp.bfloat16), w2_ref[0],
                preferred_element_type=jnp.float32) + b2_ref[0]
    h_s[...] = y

    @pl.when(layer != last)
    def _mid():
        # F.relu for all but the last layer (dropout = identity in eval)
        h_s[...] = jnp.maximum(h_s[...], 0.0)
        # virtual-node update: global_add_pool(h_in) + vn -> MLP (BN folded)
        vt = jnp.dot(bgn_ref[...], h_in_bf,
                     preferred_element_type=jnp.float32) + vn_s[...]
        u = jnp.dot(vt.astype(jnp.bfloat16), vw1_ref[0],
                    preferred_element_type=jnp.float32) + vb1_ref[0]
        u = jnp.maximum(u, 0.0)
        v = jnp.dot(u.astype(jnp.bfloat16), vw2_ref[0],
                    preferred_element_type=jnp.float32) + vb2_ref[0]
        vn_s[...] = jnp.maximum(v, 0.0)

    @pl.when(layer == last)
    def _final():
        # global_mean_pool (sum via one-hot, divide by counts) + linear head
        hg = jnp.dot(bgn_ref[...], h_s[...].astype(jnp.bfloat16),
                     preferred_element_type=jnp.float32) * invc_ref[...]
        pred_ref[...] = jnp.dot(hg.astype(jnp.bfloat16), pw_ref[...],
                                preferred_element_type=jnp.float32) + pb_ref[...]


def gnn_stack(h0, gmat, smat, bnb, bgn, invc, e_emb, p):
    n, d = h0.shape
    e = gmat.shape[0]
    g = bnb.shape[1]
    t = p['PW'].shape[1]
    d2 = 2 * d
    L = NUM_LAYER

    def rep(shape):    # whole array resident, same block every layer
        return pl.BlockSpec(shape, lambda l, _r=len(shape): (0,) * _r)

    def per_layer(shape):   # leading dim indexed by the layer grid coordinate
        return pl.BlockSpec((1,) + shape, lambda l, _r=len(shape): (l,) + (0,) * _r)

    grid_spec = pltpu.PrefetchScalarGridSpec(
        num_scalar_prefetch=0,
        grid=(L,),
        in_specs=[
            rep((n, d)),                 # h0
            rep((e, n)),                 # gather one-hot   (bf16)
            rep((n, e)),                 # scatter one-hot  (bf16)
            rep((n, g)),                 # node->graph one-hot (vn broadcast)
            rep((g, n)),                 # graph<-node one-hot (pooling)
            rep((g, 1)),                 # 1 / nodes-per-graph
            per_layer((e, d)),           # per-layer bond embeddings
            per_layer((d, d2)), per_layer((1, d2)),   # GIN MLP layer 1 (BN-folded)
            per_layer((d2, d)), per_layer((1, d)),    # GIN MLP layer 2 (+post BN)
            per_layer((d, d2)), per_layer((1, d2)),   # VN MLP layer 1 (BN-folded)
            per_layer((d2, d)), per_layer((1, d)),    # VN MLP layer 2 (BN-folded)
            rep((d, t)), rep((1, t)),    # prediction head
        ],
        out_specs=pl.BlockSpec((g, t), lambda l: (0, 0)),
        scratch_shapes=[pltpu.VMEM((n, d), jnp.float32),   # node features
                        pltpu.VMEM((g, d), jnp.float32)],  # virtual node emb
    )
    return pl.pallas_call(
        gnn_stack_kernel,
        out_shape=jax.ShapeDtypeStruct((g, t), jnp.float32),
        grid_spec=grid_spec,
        compiler_params=pltpu.CompilerParams(
            dimension_semantics=("arbitrary",),      # layers are sequential
            vmem_limit_bytes=32 * 1024 * 1024),
    )(h0, gmat, smat, bnb, bgn, invc, e_emb,
      p['W1'], p['B1'], p['W2'], p['B2'],
      p['VW1'], p['VB1'], p['VW2'], p['VB2'],
      p['PW'], p['PB'])


# -----------------------------------------------------------------------------
# Parameter init (deterministic): BN (eval, fresh running stats) folded into
# the adjacent Linear, weights stacked per layer and cast to bf16.
# -----------------------------------------------------------------------------
def _bn_fold(dim):
    gamma = jnp.ones((dim,), jnp.float32)
    beta = jnp.zeros((dim,), jnp.float32)
    mean = jnp.zeros((dim,), jnp.float32)
    var = jnp.ones((dim,), jnp.float32)
    scale = gamma * jax.lax.rsqrt(var + BN_EPS)
    shift = beta - mean * scale
    return scale, shift


def _fold_linear(w, b, scale, shift):
    # (x @ w + b) * scale + shift  ==  x @ (w*scale) + (b*scale + shift)
    return w * scale[None, :], b * scale[None, :] + shift[None, :]


def _dense(key, shape):
    return (0.1 * jax.random.normal(key, shape)).astype(jnp.float32)


def init_params(key):
    keys = iter(jax.random.split(key, 512))
    D, D2, L, T = EMB_DIM, 2 * EMB_DIM, NUM_LAYER, NUM_TASKS

    atom_tables = [_dense(next(keys), (v, D)) for v in ATOM_VOCABS]
    bond_tables = [[_dense(next(keys), (v, D)) for v in BOND_VOCABS]
                   for _ in range(L)]

    W1, B1, W2, B2 = [], [], [], []
    for _ in range(L):
        w1, b1 = _dense(next(keys), (D, D2)), _dense(next(keys), (1, D2))
        w2, b2 = _dense(next(keys), (D2, D)), _dense(next(keys), (1, D))
        s1, t1 = _bn_fold(D2)            # BN inside the GIN MLP
        sp, tp = _bn_fold(D)             # post-conv batch_norms[layer]
        w1f, b1f = _fold_linear(w1, b1, s1, t1)
        w2f, b2f = _fold_linear(w2, b2, sp, tp)
        W1.append(w1f); B1.append(b1f); W2.append(w2f); B2.append(b2f)

    VW1, VB1, VW2, VB2 = [], [], [], []
    for _ in range(L - 1):
        w1, b1 = _dense(next(keys), (D, D2)), _dense(next(keys), (1, D2))
        w2, b2 = _dense(next(keys), (D2, D)), _dense(next(keys), (1, D))
        s1, t1 = _bn_fold(D2)
        s2, t2 = _bn_fold(D)
        w1f, b1f = _fold_linear(w1, b1, s1, t1)
        w2f, b2f = _fold_linear(w2, b2, s2, t2)
        VW1.append(w1f); VB1.append(b1f); VW2.append(w2f); VB2.append(b2f)
    # pad the unused last-layer slot (guarded by pl.when(layer != last))
    VW1.append(jnp.zeros((D, D2), jnp.float32)); VB1.append(jnp.zeros((1, D2), jnp.float32))
    VW2.append(jnp.zeros((D2, D), jnp.float32)); VB2.append(jnp.zeros((1, D), jnp.float32))

    pred_w = _dense(next(keys), (D, T))   # == torch weight (T, D) transposed
    pred_b = _dense(next(keys), (1, T))

    return {
        'atom_tables': atom_tables,
        'bond_tables': bond_tables,
        'W1': jnp.stack(W1).astype(jnp.bfloat16), 'B1': jnp.stack(B1),
        'W2': jnp.stack(W2).astype(jnp.bfloat16), 'B2': jnp.stack(B2),
        'VW1': jnp.stack(VW1).astype(jnp.bfloat16), 'VB1': jnp.stack(VB1),
        'VW2': jnp.stack(VW2).astype(jnp.bfloat16), 'VB2': jnp.stack(VB2),
        'PW': pred_w.astype(jnp.bfloat16), 'PB': pred_b,
    }


# -----------------------------------------------------------------------------
# Forward (eval mode -> returns pred only)
# -----------------------------------------------------------------------------
def gnn_forward(params, node_feat, edge_feat, edge_index, batch, num_graphs):
    n = node_feat.shape[0]
    e = edge_feat.shape[0]
    src, dst = edge_index[0], edge_index[1]

    # TODO(synk): integer embedding lookups (Atom/Bond encoders) and one-hot
    # adjacency construction stay in plain JAX glue.
    h0 = jnp.zeros((n, EMB_DIM), jnp.float32)
    for f, tab in enumerate(params['atom_tables']):
        h0 = h0 + tab[node_feat[:, f]]

    e_layers = []
    for layer in range(NUM_LAYER):
        emb = jnp.zeros((e, EMB_DIM), jnp.float32)
        for f, tab in enumerate(params['bond_tables'][layer]):
            emb = emb + tab[edge_feat[:, f]]
        e_layers.append(emb)
    e_emb = jnp.stack(e_layers).astype(jnp.bfloat16)                  # (L, E, D)

    # one-hot gather/scatter/pool operands (0/1 exact in bf16)
    gmat = jax.nn.one_hot(src, n, dtype=jnp.bfloat16)                 # (E, N)
    smat = jax.nn.one_hot(dst, n, dtype=jnp.bfloat16).T               # (N, E)
    bnb = jax.nn.one_hot(batch, num_graphs, dtype=jnp.bfloat16)       # (N, G)
    bgn = bnb.T                                                       # (G, N)
    counts = jnp.maximum(bnb.astype(jnp.float32).sum(axis=0), 1.0)    # (G,)
    invc = (1.0 / counts)[:, None]                                    # (G, 1)

    return gnn_stack(h0.astype(jnp.bfloat16), gmat, smat, bnb, bgn, invc,
                     e_emb, params)


# -----------------------------------------------------------------------------
if __name__ == "__main__":
    key = jax.random.PRNGKey(0)
    k_param, k_data = jax.random.split(key)
    params = init_params(k_param)

    # Synthetic batched graph: 4 graphs x 16 nodes (64 nodes), 128 edges
    N, E, G = 64, 128, 4
    npg, epg = N // G, E // G
    dkeys = jax.random.split(k_data, 4 + 2 * G)

    nf0 = jax.random.randint(dkeys[0], (N,), 0, ATOM_VOCABS[0])
    nf1 = jax.random.randint(dkeys[1], (N,), 0, ATOM_VOCABS[1])
    node_feat = jnp.stack([nf0, nf1], axis=1).astype(jnp.int32)       # (64, 2)

    ef0 = jax.random.randint(dkeys[2], (E,), 0, BOND_VOCABS[0])
    ef1 = jax.random.randint(dkeys[3], (E,), 0, BOND_VOCABS[1])
    edge_feat = jnp.stack([ef0, ef1], axis=1).astype(jnp.int32)       # (128, 2)

    # edges stay within each graph
    src_parts, dst_parts = [], []
    for g in range(G):
        src_parts.append(jax.random.randint(dkeys[4 + 2 * g], (epg,),
                                            g * npg, (g + 1) * npg))
        dst_parts.append(jax.random.randint(dkeys[5 + 2 * g], (epg,),
                                            g * npg, (g + 1) * npg))
    edge_index = jnp.stack([jnp.concatenate(src_parts),
                            jnp.concatenate(dst_parts)]).astype(jnp.int32)  # (2, 128)

    batch = jnp.repeat(jnp.arange(G, dtype=jnp.int32), npg)           # (64,)

    fwd = jax.jit(functools.partial(gnn_forward, num_graphs=G))
    pred = fwd(params, node_feat, edge_feat, edge_index, batch)
    pred = jax.block_until_ready(pred)

    assert pred.shape == (G, NUM_TASKS), pred.shape
    assert bool(jnp.all(jnp.isfinite(pred)))
    print("KERNEL_OK")
</pallas_src>

<mosaic_0001>
module attributes {stable_mosaic.version = 11 : i64} {
  func.func @gnn_stack_kernel(%arg0: i32, %arg1: memref<64x128xbf16, #tpu.memory_space<vmem>>, %arg2: memref<128x64xbf16, #tpu.memory_space<vmem>>, %arg3: memref<64x128xbf16, #tpu.memory_space<vmem>>, %arg4: memref<64x4xbf16, #tpu.memory_space<vmem>>, %arg5: memref<4x64xbf16, #tpu.memory_space<vmem>>, %arg6: memref<4x1xf32, #tpu.memory_space<vmem>>, %arg7: memref<1x128x128xbf16, #tpu.memory_space<vmem>>, %arg8: memref<1x128x256xbf16, #tpu.memory_space<vmem>>, %arg9: memref<1x1x256xf32, #tpu.memory_space<vmem>>, %arg10: memref<1x256x128xbf16, #tpu.memory_space<vmem>>, %arg11: memref<1x1x128xf32, #tpu.memory_space<vmem>>, %arg12: memref<1x128x256xbf16, #tpu.memory_space<vmem>>, %arg13: memref<1x1x256xf32, #tpu.memory_space<vmem>>, %arg14: memref<1x256x128xbf16, #tpu.memory_space<vmem>>, %arg15: memref<1x1x128xf32, #tpu.memory_space<vmem>>, %arg16: memref<128x8xbf16, #tpu.memory_space<vmem>>, %arg17: memref<1x8xf32, #tpu.memory_space<vmem>>, %arg18: memref<4x8xf32, #tpu.memory_space<vmem>>, %arg19: memref<64x128xf32, #tpu.memory_space<vmem>>, %arg20: memref<4x128xf32, #tpu.memory_space<vmem>>) attributes {dimension_semantics = [#tpu.dimension_semantics<arbitrary>], iteration_bounds = array<i64: 5>, scalar_prefetch = 0 : i64, scratch_operands = 2 : i64, tpu.core_type = #tpu.core_type<tc>, window_params = [{pipeline_mode = #tpu.pipeline_mode<synchronous>, transform_indices = @transform_0, window_bounds = array<i64: 64, 128>}, {pipeline_mode = #tpu.pipeline_mode<synchronous>, transform_indices = @transform_1, window_bounds = array<i64: 128, 64>}, {pipeline_mode = #tpu.pipeline_mode<synchronous>, transform_indices = @transform_2, window_bounds = array<i64: 64, 128>}, {pipeline_mode = #tpu.pipeline_mode<synchronous>, transform_indices = @transform_3, window_bounds = array<i64: 64, 4>}, {pipeline_mode = #tpu.pipeline_mode<synchronous>, transform_indices = @transform_4, window_bounds = array<i64: 4, 64>}, {pipeline_mode = #tpu.pipeline_mode<synchronous>, transform_indices = @transform_5, window_bounds = array<i64: 4, 1>}, {transform_indices = @transform_6, window_bounds = array<i64: 1, 128, 128>}, {transform_indices = @transform_7, window_bounds = array<i64: 1, 128, 256>}, {transform_indices = @transform_8, window_bounds = array<i64: 1, 1, 256>}, {transform_indices = @transform_9, window_bounds = array<i64: 1, 256, 128>}, {transform_indices = @transform_10, window_bounds = array<i64: 1, 1, 128>}, {transform_indices = @transform_11, window_bounds = array<i64: 1, 128, 256>}, {transform_indices = @transform_12, window_bounds = array<i64: 1, 1, 256>}, {transform_indices = @transform_13, window_bounds = array<i64: 1, 256, 128>}, {transform_indices = @transform_14, window_bounds = array<i64: 1, 1, 128>}, {pipeline_mode = #tpu.pipeline_mode<synchronous>, transform_indices = @transform_15, window_bounds = array<i64: 128, 8>}, {pipeline_mode = #tpu.pipeline_mode<synchronous>, transform_indices = @transform_16, window_bounds = array<i64: 1, 8>}, {pipeline_mode = #tpu.pipeline_mode<synchronous>, transform_indices = @transform_17, window_bounds = array<i64: 4, 8>}]} {
    %c0_i32 = arith.constant 0 : i32
    %0 = arith.cmpi eq, %arg0, %c0_i32 : i32
    %1 = arith.extui %0 : i1 to i32
    %c0_i32_0 = arith.constant 0 : i32
    %2 = arith.cmpi ne, %1, %c0_i32_0 : i32
    scf.if %2 {
      %c0_37 = arith.constant 0 : index
      %c0_38 = arith.constant 0 : index
      %49 = vector.load %arg1[%c0_37, %c0_38] : memref<64x128xbf16, #tpu.memory_space<vmem>>, vector<64x128xbf16>
      %50 = arith.extf %49 : vector<64x128xbf16> to vector<64x128xf32>
      %c0_39 = arith.constant 0 : index
      %c0_40 = arith.constant 0 : index
      %51 = vector.load %arg19[%c0_39, %c0_40] : memref<64x128xf32, #tpu.memory_space<vmem>>, vector<64x128xf32>
      tpu.vector_store %arg19[%c0_39, %c0_40], %50 {strides = array<i32>} : memref<64x128xf32, #tpu.memory_space<vmem>>, vector<64x128xf32>,
      %cst_41 = arith.constant 0.000000e+00 : f32
      %52 = vector.broadcast %cst_41 : f32 to vector<4x128xf32>
      %c0_42 = arith.constant 0 : index
      %c0_43 = arith.constant 0 : index
      %53 = vector.load %arg20[%c0_42, %c0_43] : memref<4x128xf32, #tpu.memory_space<vmem>>, vector<4x128xf32>
      tpu.vector_store %arg20[%c0_42, %c0_43], %52 {strides = array<i32>} : memref<4x128xf32, #tpu.memory_space<vmem>>, vector<4x128xf32>,
      %cst_44 = arith.constant 0.000000e+00 : f32
      %54 = vector.broadcast %cst_44 : f32 to vector<4x8xf32>
      %c0_45 = arith.constant 0 : index
      %c0_46 = arith.constant 0 : index
      %55 = vector.load %arg18[%c0_45, %c0_46] : memref<4x8xf32, #tpu.memory_space<vmem>>, vector<4x8xf32>
      tpu.vector_store %arg18[%c0_45, %c0_46], %54 {strides = array<i32>} : memref<4x8xf32, #tpu.memory_space<vmem>>, vector<4x8xf32>,
    } else {
    }
    %c0 = arith.constant 0 : index
    %c0_1 = arith.constant 0 : index
    %3 = vector.load %arg19[%c0, %c0_1] : memref<64x128xf32, #tpu.memory_space<vmem>>, vector<64x128xf32>
    %c0_2 = arith.constant 0 : index
    %c0_3 = arith.constant 0 : index
    %4 = vector.load %arg4[%c0_2, %c0_3] : memref<64x4xbf16, #tpu.memory_space<vmem>>, vector<64x4xbf16>
    %c0_4 = arith.constant 0 : index
    %c0_5 = arith.constant 0 : index
    %5 = vector.load %arg20[%c0_4, %c0_5] : memref<4x128xf32, #tpu.memory_space<vmem>>, vector<4x128xf32>
    %6 = arith.truncf %5 : vector<4x128xf32> to vector<4x128xbf16>
    %cst = arith.constant dense<0.000000e+00> : vector<64x128xf32>
    %7 = tpu.matmul %4, %6, %cst {dimension_numbers = #tpu.dot_dimension_numbers<[1], [0], [0], [1], [0, 0, 1, 1], [], []>} : vector<64x4xbf16>, vector<4x128xbf16>, vector<64x128xf32> -> vector<64x128xf32>
    %8 = arith.addf %3, %7 : vector<64x128xf32>
    %9 = arith.truncf %8 : vector<64x128xf32> to vector<64x128xbf16>
    %c0_6 = arith.constant 0 : index
    %c0_7 = arith.constant 0 : index
    %10 = vector.load %arg2[%c0_6, %c0_7] : memref<128x64xbf16, #tpu.memory_space<vmem>>, vector<128x64xbf16>
    %cst_8 = arith.constant dense<0.000000e+00> : vector<128x128xf32>
    %11 = tpu.matmul %10, %9, %cst_8 {dimension_numbers = #tpu.dot_dimension_numbers<[1], [0], [0], [1], [0, 0, 1, 1], [], []>} : vector<128x64xbf16>, vector<64x128xbf16>, vector<128x128xf32> -> vector<128x128xf32>
    %c0_9 = arith.constant 0 : index
    %c0_10 = arith.constant 0 : index
    %c0_11 = arith.constant 0 : index
    %12 = vector.load %arg7[%c0_9, %c0_10, %c0_11] : memref<1x128x128xbf16, #tpu.memory_space<vmem>>, vector<1x128x128xbf16>
    %13 = vector.shape_cast %12 : vector<1x128x128xbf16> to vector<128x128xbf16>
    %14 = arith.extf %13 : vector<128x128xbf16> to vector<128x128xf32>
    %15 = arith.addf %11, %14 : vector<128x128xf32>
    %cst_12 = arith.constant 0.000000e+00 : f32
    %16 = vector.broadcast %cst_12 : f32 to vector<128x128xf32>
    %17 = arith.maximumf %15, %16 : vector<128x128xf32>
    %c0_13 = arith.constant 0 : index
    %c0_14 = arith.constant 0 : index
    %18 = vector.load %arg3[%c0_13, %c0_14] : memref<64x128xbf16, #tpu.memory_space<vmem>>, vector<64x128xbf16>
    %19 = arith.truncf %17 : vector<128x128xf32> to vector<128x128xbf16>
    %cst_15 = arith.constant dense<0.000000e+00> : vector<64x128xf32>
    %20 = tpu.matmul %18, %19, %cst_15 {dimension_numbers = #tpu.dot_dimension_numbers<[1], [0], [0], [1], [0, 0, 1, 1], [], []>} : vector<64x128xbf16>, vector<128x128xbf16>, vector<64x128xf32> -> vector<64x128xf32>
    %cst_16 = arith.constant 1.000000e+00 : f32
    %21 = vector.broadcast %cst_16 : f32 to vector<64x128xf32>
    %22 = arith.mulf %21, %8 : vector<64x128xf32>
    %23 = arith.addf %22, %20 : vector<64x128xf32>
    %24 = arith.truncf %23 : vector<64x128xf32> to vector<64x128xbf16>
    %c0_17 = arith.constant 0 : index
    %c0_18 = arith.constant 0 : index
    %c0_19 = arith.constant 0 : index
    %25 = vector.load %arg8[%c0_17, %c0_18, %c0_19] : memref<1x128x256xbf16, #tpu.memory_space<vmem>>, vector<1x128x256xbf16>
    %26 = vector.shape_cast %25 : vector<1x128x256xbf16> to vector<128x256xbf16>
    %cst_20 = arith.constant dense<0.000000e+00> : vector<64x256xf32>
    %27 = tpu.matmul %24, %26, %cst_20 {dimension_numbers = #tpu.dot_dimension_numbers<[1], [0], [0], [1], [0, 0, 1, 1], [], []>} : vector<64x128xbf16>, vector<128x256xbf16>, vector<64x256xf32> -> vector<64x256xf32>
    %c0_21 = arith.constant 0 : index
    %c0_22 = arith.constant 0 : index
    %c0_23 = arith.constant 0 : index
    %28 = vector.load %arg9[%c0_21, %c0_22, %c0_23] : memref<1x1x256xf32, #tpu.memory_space<vmem>>, vector<1x1x256xf32>
    %29 = vector.shape_cast %28 : vector<1x1x256xf32> to vector<1x256xf32>
    %30 = vector.broadcast %29 : vector<1x256xf32> to vector<64x256xf32>
    %31 = arith.addf %27, %30 : vector<64x256xf32>
    %cst_24 = arith.constant 0.000000e+00 : f32
    %32 = vector.broadcast %cst_24 : f32 to vector<64x256xf32>
    %33 = arith.maximumf %31, %32 : vector<64x256xf32>
    %34 = arith.truncf %33 : vector<64x256xf32> to vector<64x256xbf16>
    %c0_25 = arith.constant 0 : index
    %c0_26 = arith.constant 0 : index
    %c0_27 = arith.constant 0 : index
    %35 = vector.load %arg10[%c0_25, %c0_26, %c0_27] : memref<1x256x128xbf16, #tpu.memory_space<vmem>>, vector<1x256x128xbf16>
    %36 = vector.shape_cast %35 : vector<1x256x128xbf16> to vector<256x128xbf16>
    %cst_28 = arith.constant dense<0.000000e+00> : vector<64x128xf32>
    %37 = tpu.matmul %34, %36, %cst_28 {dimension_numbers = #tpu.dot_dimension_numbers<[1], [0], [0], [1], [0, 0, 1, 1], [], []>} : vector<64x256xbf16>, vector<256x128xbf16>, vector<64x128xf32> -> vector<64x128xf32>
    %c0_29 = arith.constant 0 : index
    %c0_30 = arith.constant 0 : index
    %c0_31 = arith.constant 0 : index
    %38 = vector.load %arg11[%c0_29, %c0_30, %c0_31] : memref<1x1x128xf32, #tpu.memory_space<vmem>>, vector<1x1x128xf32>
    %39 = vector.shape_cast %38 : vector<1x1x128xf32> to vector<1x128xf32>
    %40 = vector.broadcast %39 : vector<1x128xf32> to vector<64x128xf32>
    %41 = arith.addf %37, %40 : vector<64x128xf32>
    %c0_32 = arith.constant 0 : index
    %c0_33 = arith.constant 0 : index
    %42 = vector.load %arg19[%c0_32, %c0_33] : memref<64x128xf32, #tpu.memory_space<vmem>>, vector<64x128xf32>
    tpu.vector_store %arg19[%c0_32, %c0_33], %41 {strides = array<i32>} : memref<64x128xf32, #tpu.memory_space<vmem>>, vector<64x128xf32>,
    %c4_i32 = arith.constant 4 : i32
    %43 = arith.cmpi ne, %arg0, %c4_i32 : i32
    %44 = arith.extui %43 : i1 to i32
    %c0_i32_34 = arith.constant 0 : i32
    %45 = arith.cmpi ne, %44, %c0_i32_34 : i32
    scf.if %45 {
      %c0_37 = arith.constant 0 : index
      %c0_38 = arith.constant 0 : index
      %49 = vector.load %arg19[%c0_37, %c0_38] : memref<64x128xf32, #tpu.memory_space<vmem>>, vector<64x128xf32>
      %cst_39 = arith.constant 0.000000e+00 : f32
      %50 = vector.broadcast %cst_39 : f32 to vector<64x128xf32>
      %51 = arith.maximumf %49, %50 : vector<64x128xf32>
      %c0_40 = arith.constant 0 : index
      %c0_41 = arith.constant 0 : index
      %52 = vector.load %arg19[%c0_40, %c0_41] : memref<64x128xf32, #tpu.memory_space<vmem>>, vector<64x128xf32>
      tpu.vector_store %arg19[%c0_40, %c0_41], %51 {strides = array<i32>} : memref<64x128xf32, #tpu.memory_space<vmem>>, vector<64x128xf32>,
      %c0_42 = arith.constant 0 : index
      %c0_43 = arith.constant 0 : index
      %53 = vector.load %arg5[%c0_42, %c0_43] : memref<4x64xbf16, #tpu.memory_space<vmem>>, vector<4x64xbf16>
      %cst_44 = arith.constant dense<0.000000e+00> : vector<4x128xf32>
      %54 = tpu.matmul %53, %9, %cst_44 {dimension_numbers = #tpu.dot_dimension_numbers<[1], [0], [0], [1], [0, 0, 1, 1], [], []>} : vector<4x64xbf16>, vector<64x128xbf16>, vector<4x128xf32> -> vector<4x128xf32>
      %c0_45 = arith.constant 0 : index
      %c0_46 = arith.constant 0 : index
      %55 = vector.load %arg20[%c0_45, %c0_46] : memref<4x128xf32, #tpu.memory_space<vmem>>, vector<4x128xf32>
      %56 = arith.addf %54, %55 : vector<4x128xf32>
      %57 = arith.truncf %56 : vector<4x128xf32> to vector<4x128xbf16>
      %c0_47 = arith.constant 0 : index
      %c0_48 = arith.constant 0 : index
      %c0_49 = arith.constant 0 : index
      %58 = vector.load %arg12[%c0_47, %c0_48, %c0_49] : memref<1x128x256xbf16, #tpu.memory_space<vmem>>, vector<1x128x256xbf16>
      %59 = vector.shape_cast %58 : vector<1x128x256xbf16> to vector<128x256xbf16>
      %cst_50 = arith.constant dense<0.000000e+00> : vector<4x256xf32>
      %60 = tpu.matmul %57, %59, %cst_50 {dimension_numbers = #tpu.dot_dimension_numbers<[1], [0], [0], [1], [0, 0, 1, 1], [], []>} : vector<4x128xbf16>, vector<128x256xbf16>, vector<4x256xf32> -> vector<4x256xf32>
      %c0_51 = arith.constant 0 : index
      %c0_52 = arith.constant 0 : index
      %c0_53 = arith.constant 0 : index
      %61 = vector.load %arg13[%c0_51, %c0_52, %c0_53] : memref<1x1x256xf32, #tpu.memory_space<vmem>>, vector<1x1x256xf32>
      %62 = vector.shape_cast %61 : vector<1x1x256xf32> to vector<1x256xf32>
      %63 = vector.broadcast %62 : vector<1x256xf32> to vector<4x256xf32>
      %64 = arith.addf %60, %63 : vector<4x256xf32>
      %cst_54 = arith.constant 0.000000e+00 : f32
      %65 = vector.broadcast %cst_54 : f32 to vector<4x256xf32>
      %66 = arith.maximumf %64, %65 : vector<4x256xf32>
      %67 = arith.truncf %66 : vector<4x256xf32> to vector<4x256xbf16>
      %c0_55 = arith.constant 0 : index
      %c0_56 = arith.constant 0 : index
      %c0_57 = arith.constant 0 : index
      %68 = vector.load %arg14[%c0_55, %c0_56, %c0_57] : memref<1x256x128xbf16, #tpu.memory_space<vmem>>, vector<1x256x128xbf16>
      %69 = vector.shape_cast %68 : vector<1x256x128xbf16> to vector<256x128xbf16>
      %cst_58 = arith.constant dense<0.000000e+00> : vector<4x128xf32>
      %70 = tpu.matmul %67, %69, %cst_58 {dimension_numbers = #tpu.dot_dimension_numbers<[1], [0], [0], [1], [0, 0, 1, 1], [], []>} : vector<4x256xbf16>, vector<256x128xbf16>, vector<4x128xf32> -> vector<4x128xf32>
      %c0_59 = arith.constant 0 : index
      %c0_60 = arith.constant 0 : index
      %c0_61 = arith.constant 0 : index
      %71 = vector.load %arg15[%c0_59, %c0_60, %c0_61] : memref<1x1x128xf32, #tpu.memory_space<vmem>>, vector<1x1x128xf32>
      %72 = vector.shape_cast %71 : vector<1x1x128xf32> to vector<1x128xf32>
      %73 = vector.broadcast %72 : vector<1x128xf32> to vector<4x128xf32>
      %74 = arith.addf %70, %73 : vector<4x128xf32>
      %cst_62 = arith.constant 0.000000e+00 : f32
      %75 = vector.broadcast %cst_62 : f32 to vector<4x128xf32>
      %76 = arith.maximumf %74, %75 : vector<4x128xf32>
      %c0_63 = arith.constant 0 : index
      %c0_64 = arith.constant 0 : index
      %77 = vector.load %arg20[%c0_63, %c0_64] : memref<4x128xf32, #tpu.memory_space<vmem>>, vector<4x128xf32>
      tpu.vector_store %arg20[%c0_63, %c0_64], %76 {strides = array<i32>} : memref<4x128xf32, #tpu.memory_space<vmem>>, vector<4x128xf32>,
    } else {
    }
    %c4_i32_35 = arith.constant 4 : i32
    %46 = arith.cmpi eq, %arg0, %c4_i32_35 : i32
    %47 = arith.extui %46 : i1 to i32
    %c0_i32_36 = arith.constant 0 : i32
    %48 = arith.cmpi ne, %47, %c0_i32_36 : i32
    scf.if %48 {
      %c0_37 = arith.constant 0 : index
      %c0_38 = arith.constant 0 : index
      %49 = vector.load %arg5[%c0_37, %c0_38] : memref<4x64xbf16, #tpu.memory_space<vmem>>, vector<4x64xbf16>
      %c0_39 = arith.constant 0 : index
      %c0_40 = arith.constant 0 : index
      %50 = vector.load %arg19[%c0_39, %c0_40] : memref<64x128xf32, #tpu.memory_space<vmem>>, vector<64x128xf32>
      %51 = arith.truncf %50 : vector<64x128xf32> to vector<64x128xbf16>
      %cst_41 = arith.constant dense<0.000000e+00> : vector<4x128xf32>
      %52 = tpu.matmul %49, %51, %cst_41 {dimension_numbers = #tpu.dot_dimension_numbers<[1], [0], [0], [1], [0, 0, 1, 1], [], []>} : vector<4x64xbf16>, vector<64x128xbf16>, vector<4x128xf32> -> vector<4x128xf32>
      %c0_42 = arith.constant 0 : index
      %c0_43 = arith.constant 0 : index
      %53 = vector.load %arg6[%c0_42, %c0_43] : memref<4x1xf32, #tpu.memory_space<vmem>>, vector<4x1xf32>
      %54 = vector.broadcast %53 : vector<4x1xf32> to vector<4x128xf32>
      %55 = arith.mulf %52, %54 : vector<4x128xf32>
      %56 = arith.truncf %55 : vector<4x128xf32> to vector<4x128xbf16>
      %c0_44 = arith.constant 0 : index
      %c0_45 = arith.constant 0 : index
      %57 = vector.load %arg16[%c0_44, %c0_45] : memref<128x8xbf16, #tpu.memory_space<vmem>>, vector<128x8xbf16>
      %cst_46 = arith.constant dense<0.000000e+00> : vector<4x8xf32>
      %58 = tpu.matmul %56, %57, %cst_46 {dimension_numbers = #tpu.dot_dimension_numbers<[1], [0], [0], [1], [0, 0, 1, 1], [], []>} : vector<4x128xbf16>, vector<128x8xbf16>, vector<4x8xf32> -> vector<4x8xf32>
      %c0_47 = arith.constant 0 : index
      %c0_48 = arith.constant 0 : index
      %59 = vector.load %arg17[%c0_47, %c0_48] : memref<1x8xf32, #tpu.memory_space<vmem>>, vector<1x8xf32>
      %60 = vector.broadcast %59 : vector<1x8xf32> to vector<4x8xf32>
      %61 = arith.addf %58, %60 : vector<4x8xf32>
      %c0_49 = arith.constant 0 : index
      %c0_50 = arith.constant 0 : index
      %62 = vector.load %arg18[%c0_49, %c0_50] : memref<4x8xf32, #tpu.memory_space<vmem>>, vector<4x8xf32>
      tpu.vector_store %arg18[%c0_49, %c0_50], %61 {strides = array<i32>} : memref<4x8xf32, #tpu.memory_space<vmem>>, vector<4x8xf32>,
    } else {
    }
    return
  }
  func.func @transform_0(%arg0: i32) -> (i32, i32) {
    %c0_i32 = arith.constant 0 : i32
    %c0_i32_0 = arith.constant 0 : i32
    %c0_i32_1 = arith.constant 0 : i32
    return %c0_i32, %c0_i32_0 : i32, i32
  }
  func.func @transform_1(%arg0: i32) -> (i32, i32) {
    %c0_i32 = arith.constant 0 : i32
    %c0_i32_0 = arith.constant 0 : i32
    %c0_i32_1 = arith.constant 0 : i32
    return %c0_i32, %c0_i32_0 : i32, i32
  }
  func.func @transform_2(%arg0: i32) -> (i32, i32) {
    %c0_i32 = arith.constant 0 : i32
    %c0_i32_0 = arith.constant 0 : i32
    %c0_i32_1 = arith.constant 0 : i32
    return %c0_i32, %c0_i32_0 : i32, i32
  }
  func.func @transform_3(%arg0: i32) -> (i32, i32) {
    %c0_i32 = arith.constant 0 : i32
    %c0_i32_0 = arith.constant 0 : i32
    %c0_i32_1 = arith.constant 0 : i32
    return %c0_i32, %c0_i32_0 : i32, i32
  }
  func.func @transform_4(%arg0: i32) -> (i32, i32) {
    %c0_i32 = arith.constant 0 : i32
    %c0_i32_0 = arith.constant 0 : i32
    %c0_i32_1 = arith.constant 0 : i32
    return %c0_i32, %c0_i32_0 : i32, i32
  }
  func.func @transform_5(%arg0: i32) -> (i32, i32) {
    %c0_i32 = arith.constant 0 : i32
    %c0_i32_0 = arith.constant 0 : i32
    %c0_i32_1 = arith.constant 0 : i32
    return %c0_i32, %c0_i32_0 : i32, i32
  }
  func.func @transform_6(%arg0: i32) -> (i32, i32, i32) {
    %c0_i32 = arith.constant 0 : i32
    %c0_i32_0 = arith.constant 0 : i32
    %c0_i32_1 = arith.constant 0 : i32
    return %arg0, %c0_i32, %c0_i32_0 : i32, i32, i32
  }
  func.func @transform_7(%arg0: i32) -> (i32, i32, i32) {
    %c0_i32 = arith.constant 0 : i32
    %c0_i32_0 = arith.constant 0 : i32
    %c0_i32_1 = arith.constant 0 : i32
    return %arg0, %c0_i32, %c0_i32_0 : i32, i32, i32
  }
  func.func @transform_8(%arg0: i32) -> (i32, i32, i32) {
    %c0_i32 = arith.constant 0 : i32
    %c0_i32_0 = arith.constant 0 : i32
    %c0_i32_1 = arith.constant 0 : i32
    return %arg0, %c0_i32, %c0_i32_0 : i32, i32, i32
  }
  func.func @transform_9(%arg0: i32) -> (i32, i32, i32) {
    %c0_i32 = arith.constant 0 : i32
    %c0_i32_0 = arith.constant 0 : i32
    %c0_i32_1 = arith.constant 0 : i32
    return %arg0, %c0_i32, %c0_i32_0 : i32, i32, i32
  }
  func.func @transform_10(%arg0: i32) -> (i32, i32, i32) {
    %c0_i32 = arith.constant 0 : i32
    %c0_i32_0 = arith.constant 0 : i32
    %c0_i32_1 = arith.constant 0 : i32
    return %arg0, %c0_i32, %c0_i32_0 : i32, i32, i32
  }
  func.func @transform_11(%arg0: i32) -> (i32, i32, i32) {
    %c0_i32 = arith.constant 0 : i32
    %c0_i32_0 = arith.constant 0 : i32
    %c0_i32_1 = arith.constant 0 : i32
    return %arg0, %c0_i32, %c0_i32_0 : i32, i32, i32
  }
  func.func @transform_12(%arg0: i32) -> (i32, i32, i32) {
    %c0_i32 = arith.constant 0 : i32
    %c0_i32_0 = arith.constant 0 : i32
    %c0_i32_1 = arith.constant 0 : i32
    return %arg0, %c0_i32, %c0_i32_0 : i32, i32, i32
  }
  func.func @transform_13(%arg0: i32) -> (i32, i32, i32) {
    %c0_i32 = arith.constant 0 : i32
    %c0_i32_0 = arith.constant 0 : i32
    %c0_i32_1 = arith.constant 0 : i32
    return %arg0, %c0_i32, %c0_i32_0 : i32, i32, i32
  }
  func.func @transform_14(%arg0: i32) -> (i32, i32, i32) {
    %c0_i32 = arith.constant 0 : i32
    %c0_i32_0 = arith.constant 0 : i32
    %c0_i32_1 = arith.constant 0 : i32
    return %arg0, %c0_i32, %c0_i32_0 : i32, i32, i32
  }
  func.func @transform_15(%arg0: i32) -> (i32, i32) {
    %c0_i32 = arith.constant 0 : i32
    %c0_i32_0 = arith.constant 0 : i32
    %c0_i32_1 = arith.constant 0 : i32
    return %c0_i32, %c0_i32_0 : i32, i32
  }
  func.func @transform_16(%arg0: i32) -> (i32, i32) {
    %c0_i32 = arith.constant 0 : i32
    %c0_i32_0 = arith.constant 0 : i32
    %c0_i32_1 = arith.constant 0 : i32
    return %c0_i32, %c0_i32_0 : i32, i32
  }
  func.func @transform_17(%arg0: i32) -> (i32, i32) {
    %c0_i32 = arith.constant 0 : i32
    %c0_i32_0 = arith.constant 0 : i32
    %c0_i32_1 = arith.constant 0 : i32
    return %c0_i32, %c0_i32_0 : i32, i32
  }
}

</mosaic_0001>

<llo_original>
// kernel: gnn_forward.1
$region0: #{gnn_forward.1}
  #allocation0 [shape = 'u32[]', space=smem, size = 0x4, offset = 0x4, fixed_abs, tag = 'smem constant byte address 0x4 - core index']
  #allocation1 [shape = 'u32[72,128]{1,0:T(1,128)}', space=vmem, size = 0x9000, scoped, tag = 'internal scratch']
  #allocation2 [shape = 'f32[64,128]{1,0:T(8,128)}', space=vmem, size = 0x8000, scoped, tag = 'scratch operand']
  #allocation3 [shape = 'f32[4,128]{1,0:T(4,128)}', space=vmem, size = 0x800, scoped, tag = 'scratch operand']
  %s0 = inlined_call_operand.vmem [shape: bf16[64,128], index: 0, kind: input, shape index: {}]
  %s1 = inlined_call_operand.vmem [shape: bf16[128,64], index: 1, kind: input, shape index: {}]
  %s2 = inlined_call_operand.vmem [shape: bf16[64,128], index: 2, kind: input, shape index: {}]
  %s3 = inlined_call_operand.vmem [shape: bf16[64,4], index: 3, kind: input, shape index: {}]
  %s4 = inlined_call_operand.vmem [shape: bf16[4,64], index: 4, kind: input, shape index: {}]
  %s5 = inlined_call_operand.vmem [shape: f32[4,1], index: 5, kind: input, shape index: {}]
  %s6 = inlined_call_operand.vmem [shape: bf16[5,128,128], index: 6, kind: input, shape index: {}]
  %s7 = inlined_call_operand.vmem [shape: bf16[5,128,256], index: 7, kind: input, shape index: {}]
  %s8 = inlined_call_operand.vmem [shape: f32[5,1,256], index: 8, kind: input, shape index: {}]
  %s9 = inlined_call_operand.vmem [shape: bf16[5,256,128], index: 9, kind: input, shape index: {}]
  %s10 = inlined_call_operand.vmem [shape: f32[5,1,128], index: 10, kind: input, shape index: {}]
  %s11 = inlined_call_operand.vmem [shape: bf16[5,128,256], index: 11, kind: input, shape index: {}]
  %s12 = inlined_call_operand.vmem [shape: f32[5,1,256], index: 12, kind: input, shape index: {}]
  %s13 = inlined_call_operand.vmem [shape: bf16[5,256,128], index: 13, kind: input, shape index: {}]
  %s14 = inlined_call_operand.vmem [shape: f32[5,1,128], index: 14, kind: input, shape index: {}]
  %s15 = inlined_call_operand.vmem [shape: bf16[128,8], index: 15, kind: input, shape index: {}]
  %s16 = inlined_call_operand.vmem [shape: f32[1,8], index: 16, kind: input, shape index: {}]
  %s17 = inlined_call_operand.hbm [shape: f32[4,8], index: 17, kind: output, shape index: {}]
  %s18 = sld [smem:[#allocation0]]
  $region113: #{gnn_forward.1} parent=0
    _
  %s20 = ssub.s32 1, %s18
  %s21 = scalar_select 0, %s20, %s18
  $region1: #{gnn_forward.1} parent=0
    #allocation4 [shape = 'u8[2048]{0}', space=vmem, size = 0x800, scoped, tag = 'output window, operand 0, single buffered']
    #allocation5 [shape = 's32[2]{0}', space=sflag, size = 0x8, scoped, tag = 'scoped memory for gnn_forward.1']
    %22 = vsyncpa [#allocation5], 0
    loop: start=0, step=1, limit=7
    $region2: #{gnn_forward.1} parent=1 // loop_pre_header
      _
    $region3: #{gnn_forward.1} parent=1 // loop_header
      %s24 = sphi 0, %s28
      %p25 = scmp.ge.s32.totalorder %s24, 7
      %s32 = sphi 0, %s32
      %s34 = sphi 0, %s32
      %s35 = sphi 0, %s34
      %s49 = sphi 0, %s35
      %s53 = sphi 0, %s53
      %s55 = sphi 0, %s53
      %s56 = sphi 0, %s55
      %s70 = sphi 0, %s56
      %s74 = sphi 0, %s74
      %s76 = sphi 0, %s74
      %s77 = sphi 0, %s76
      %s91 = sphi 0, %s77
      %s95 = sphi 0, %s95
      %s97 = sphi 0, %s95
      %s98 = sphi 0, %s97
      %s112 = sphi 0, %s98
      %s116 = sphi 0, %s116
      %s118 = sphi 0, %s116
      %s119 = sphi 0, %s118
      %s133 = sphi 0, %s119
      %s137 = sphi 0, %s137
      %s139 = sphi 0, %s137
      %s140 = sphi 0, %s139
      %s154 = sphi 0, %s140
      %s160 = sphi 0, %s162
      %s163 = sphi 0, %s160
      %s164 = sphi 0, %s163
      %s180 = sphi 0, %s164
      %s186 = sphi 0, %s188
      %s189 = sphi 0, %s186
      %s190 = sphi 0, %s189
      %s206 = sphi 0, %s190
      %s212 = sphi 0, %s214
      %s215 = sphi 0, %s212
      %s216 = sphi 0, %s215
      %s232 = sphi 0, %s216
      %s238 = sphi 0, %s240
      %s241 = sphi 0, %s238
      %s242 = sphi 0, %s241
      %s258 = sphi 0, %s242
      %s264 = sphi 0, %s266
      %s267 = sphi 0, %s264
      %s268 = sphi 0, %s267
      %s284 = sphi 0, %s268
      %s290 = sphi 0, %s292
      %s293 = sphi 0, %s290
      %s294 = sphi 0, %s293
      %s310 = sphi 0, %s294
      %s316 = sphi 0, %s318
      %s319 = sphi 0, %s316
      %s320 = sphi 0, %s319
      %s336 = sphi 0, %s320
      %s342 = sphi 0, %s344
      %s345 = sphi 0, %s342
      %s346 = sphi 0, %s345
      %s362 = sphi 0, %s346
      %s368 = sphi 0, %s370
      %s371 = sphi 0, %s368
      %s372 = sphi 0, %s371
      %s388 = sphi 0, %s372
      %s392 = sphi 0, %s392
      %s394 = sphi 0, %s392
      %s395 = sphi 0, %s394
      %s409 = sphi 0, %s395
      %s413 = sphi 0, %s413
      %s415 = sphi 0, %s413
      %s416 = sphi 0, %s415
      %s430 = sphi 0, %s416
      %s434 = sphi 0, %s434
      %s436 = sphi 0, %s434
      %s437 = sphi 0, %s436
      %s451 = sphi 0, %s437
    $region4: #{gnn_forward.1} parent=1 // loop_header_branch
      %27 = sbr.rel (%p25) target = $region8
    $region5: #{gnn_forward.1} parent=1 // loop_body
      %s29 = ssub.s32 %s24, 1
      %s30 = ssub.s32 %s24, 2
      %s31 = sadd.s32 %s24, 1
      %s33 = sadd.s32 %s32, 1
      %p36 = scmp.eq.s32.totalorder %s24, 4
      %p37 = scmp.ne.s32.totalorder %s32, %s34
      %p38 = scmp.eq.s32.totalorder %s24, 0
      %p39 = por %p37, %p38
      %p40 = scmp.ne.s32.totalorder %s32, %s34
      %p41 = scmp.eq.s32.totalorder %s29, 4
      %p42 = por %p40, %p41
      %p43 = scmp.ne.s32.totalorder %s34, %s35
      %p44 = scmp.eq.s32.totalorder %s29, 0
      %p45 = por %p43, %p44
      %p46 = scmp.ne.s32.totalorder %s34, %s35
      %p47 = scmp.eq.s32.totalorder %s30, 4
      %p48 = por %p46, %p47
      %p50 = scmp.ne.s32.totalorder %s35, %s49
      %p51 = scmp.eq.s32.totalorder %s30, 0
      %p52 = por %p50, %p51
      %s54 = sadd.s32 %s53, 1
      %p57 = scmp.eq.s32.totalorder %s24, 4
      %p58 = scmp.ne.s32.totalorder %s53, %s55
      %p59 = scmp.eq.s32.totalorder %s24, 0
      %p60 = por %p58, %p59
      %p61 = scmp.ne.s32.totalorder %s53, %s55
      %p62 = scmp.eq.s32.totalorder %s29, 4
      %p63 = por %p61, %p62
      %p64 = scmp.ne.s32.totalorder %s55, %s56
      %p65 = scmp.eq.s32.totalorder %s29, 0
      %p66 = por %p64, %p65
      %p67 = scmp.ne.s32.totalorder %s55, %s56
      %p68 = scmp.eq.s32.totalorder %s30, 4
      %p69 = por %p67, %p68
      %p71 = scmp.ne.s32.totalorder %s56, %s70
      %p72 = scmp.eq.s32.totalorder %s30, 0
      %p73 = por %p71, %p72
      %s75 = sadd.s32 %s74, 1
      %p78 = scmp.eq.s32.totalorder %s24, 4
      %p79 = scmp.ne.s32.totalorder %s74, %s76
      %p80 = scmp.eq.s32.totalorder %s24, 0
      %p81 = por %p79, %p80
      %p82 = scmp.ne.s32.totalorder %s74, %s76
      %p83 = scmp.eq.s32.totalorder %s29, 4
      %p84 = por %p82, %p83
      %p85 = scmp.ne.s32.totalorder %s76, %s77
      %p86 = scmp.eq.s32.totalorder %s29, 0
      %p87 = por %p85, %p86
      %p88 = scmp.ne.s32.totalorder %s76, %s77
      %p89 = scmp.eq.s32.totalorder %s30, 4
      %p90 = por %p88, %p89
      %p92 = scmp.ne.s32.totalorder %s77, %s91
      %p93 = scmp.eq.s32.totalorder %s30, 0
      %p94 = por %p92, %p93
      %s96 = sadd.s32 %s95, 1
      %p99 = scmp.eq.s32.totalorder %s24, 4
      %p100 = scmp.ne.s32.totalorder %s95, %s97
      %p101 = scmp.eq.s32.totalorder %s24, 0
      %p102 = por %p100, %p101
      %p103 = scmp.ne.s32.totalorder %s95, %s97
      %p104 = scmp.eq.s32.totalorder %s29, 4
      %p105 = por %p103, %p104
      %p106 = scmp.ne.s32.totalorder %s97, %s98
      %p107 = scmp.eq.s32.totalorder %s29, 0
      %p108 = por %p106, %p107
      %p109 = scmp.ne.s32.totalorder %s97, %s98
      %p110 = scmp.eq.s32.totalorder %s30, 4
      %p111 = por %p109, %p110
      %p113 = scmp.ne.s32.totalorder %s98, %s112
      %p114 = scmp.eq.s32.totalorder %s30, 0
      %p115 = por %p113, %p114
      %s117 = sadd.s32 %s116, 1
      %p120 = scmp.eq.s32.totalorder %s24, 4
      %p121 = scmp.ne.s32.totalorder %s116, %s118
      %p122 = scmp.eq.s32.totalorder %s24, 0
      %p123 = por %p121, %p122
      %p124 = scmp.ne.s32.totalorder %s116, %s118
      %p125 = scmp.eq.s32.totalorder %s29, 4
      %p126 = por %p124, %p125
      %p127 = scmp.ne.s32.totalorder %s118, %s119
      %p128 = scmp.eq.s32.totalorder %s29, 0
      %p129 = por %p127, %p128
      %p130 = scmp.ne.s32.totalorder %s118, %s119
      %p131 = scmp.eq.s32.totalorder %s30, 4
      %p132 = por %p130, %p131
      %p134 = scmp.ne.s32.totalorder %s119, %s133
      %p135 = scmp.eq.s32.totalorder %s30, 0
      %p136 = por %p134, %p135
      %s138 = sadd.s32 %s137, 1
      %p141 = scmp.eq.s32.totalorder %s24, 4
      %p142 = scmp.ne.s32.totalorder %s137, %s139
      %p143 = scmp.eq.s32.totalorder %s24, 0
      %p144 = por %p142, %p143
      %p145 = scmp.ne.s32.totalorder %s137, %s139
      %p146 = scmp.eq.s32.totalorder %s29, 4
      %p147 = por %p145, %p146
      %p148 = scmp.ne.s32.totalorder %s139, %s140
      %p149 = scmp.eq.s32.totalorder %s29, 0
      %p150 = por %p148, %p149
      %p151 = scmp.ne.s32.totalorder %s139, %s140
      %p152 = scmp.eq.s32.totalorder %s30, 4
      %p153 = por %p151, %p152
      %p155 = scmp.ne.s32.totalorder %s140, %s154
      %p156 = scmp.eq.s32.totalorder %s30, 0
      %p157 = por %p155, %p156
      %s158 = ssub.s32 %s24, %s31
      %p159 = scmp.eq.s32.totalorder %s158, 0
      %s161 = sadd.s32 %s160, 1
      %s162 = scalar_select %p159, %s160, %s161
      %p165 = pneg %p159
      %p166 = scmp.eq.s32.totalorder %s24, 4
      %p167 = por %p165, %p166
      %p168 = scmp.ne.s32.totalorder %s160, %s163
      %p169 = scmp.eq.s32.totalorder %s24, 0
      %p170 = por %p168, %p169
      %p171 = scmp.ne.s32.totalorder %s160, %s163
      %p172 = scmp.eq.s32.totalorder %s29, 4
      %p173 = por %p171, %p172
      %p174 = scmp.ne.s32.totalorder %s163, %s164
      %p175 = scmp.eq.s32.totalorder %s29, 0
      %p176 = por %p174, %p175
      %p177 = scmp.ne.s32.totalorder %s163, %s164
      %p178 = scmp.eq.s32.totalorder %s30, 4
      %p179 = por %p177, %p178
      %p181 = scmp.ne.s32.totalorder %s164, %s180
      %p182 = scmp.eq.s32.totalorder %s30, 0
      %p183 = por %p181, %p182
      %s184 = ssub.s32 %s24, %s31
      %p185 = scmp.eq.s32.totalorder %s184, 0
      %s187 = sadd.s32 %s186, 1
      %s188 = scalar_select %p185, %s186, %s187
      %p191 = pneg %p185
      %p192 = scmp.eq.s32.totalorder %s24, 4
      %p193 = por %p191, %p192
      %p194 = scmp.ne.s32.totalorder %s186, %s189
      %p195 = scmp.eq.s32.totalorder %s24, 0
      %p196 = por %p194, %p195
      %p197 = scmp.ne.s32.totalorder %s186, %s189
      %p198 = scmp.eq.s32.totalorder %s29, 4
      %p199 = por %p197, %p198
      %p200 = scmp.ne.s32.totalorder %s189, %s190
      %p201 = scmp.eq.s32.totalorder %s29, 0
      %p202 = por %p200, %p201
      %p203 = scmp.ne.s32.totalorder %s189, %s190
      %p204 = scmp.eq.s32.totalorder %s30, 4
      %p205 = por %p203, %p204
      %p207 = scmp.ne.s32.totalorder %s190, %s206
      %p208 = scmp.eq.s32.totalorder %s30, 0
      %p209 = por %p207, %p208
      %s210 = ssub.s32 %s24, %s31
      %p211 = scmp.eq.s32.totalorder %s210, 0
      %s213 = sadd.s32 %s212, 1
      %s214 = scalar_select %p211, %s212, %s213
      %p217 = pneg %p211
      %p218 = scmp.eq.s32.totalorder %s24, 4
      %p219 = por %p217, %p218
      %p220 = scmp.ne.s32.totalorder %s212, %s215
      %p221 = scmp.eq.s32.totalorder %s24, 0
      %p222 = por %p220, %p221
      %p223 = scmp.ne.s32.totalorder %s212, %s215
      %p224 = scmp.eq.s32.totalorder %s29, 4
      %p225 = por %p223, %p224
      %p226 = scmp.ne.s32.totalorder %s215, %s216
      %p227 = scmp.eq.s32.totalorder %s29, 0
      %p228 = por %p226, %p227
      %p229 = scmp.ne.s32.totalorder %s215, %s216
      %p230 = scmp.eq.s32.totalorder %s30, 4
      %p231 = por %p229, %p230
      %p233 = scmp.ne.s32.totalorder %s216, %s232
      %p234 = scmp.eq.s32.totalorder %s30, 0
      %p235 = por %p233, %p234
      %s236 = ssub.s32 %s24, %s31
      %p237 = scmp.eq.s32.totalorder %s236, 0
      %s239 = sadd.s32 %s238, 1
      %s240 = scalar_select %p237, %s238, %s239
      %p243 = pneg %p237
      %p244 = scmp.eq.s32.totalorder %s24, 4
      %p245 = por %p243, %p244
      %p246 = scmp.ne.s32.totalorder %s238, %s241
      %p247 = scmp.eq.s32.totalorder %s24, 0
      %p248 = por %p246, %p247
      %p249 = scmp.ne.s32.totalorder %s238, %s241
      %p250 = scmp.eq.s32.totalorder %s29, 4
      %p251 = por %p249, %p250
      %p252 = scmp.ne.s32.totalorder %s241, %s242
      %p253 = scmp.eq.s32.totalorder %s29, 0
      %p254 = por %p252, %p253
      %p255 = scmp.ne.s32.totalorder %s241, %s242
      %p256 = scmp.eq.s32.totalorder %s30, 4
      %p257 = por %p255, %p256
      %p259 = scmp.ne.s32.totalorder %s242, %s258
      %p260 = scmp.eq.s32.totalorder %s30, 0
      %p261 = por %p259, %p260
      %s262 = ssub.s32 %s24, %s31
      %p263 = scmp.eq.s32.totalorder %s262, 0
      %s265 = sadd.s32 %s264, 1
      %s266 = scalar_select %p263, %s264, %s265
      %p269 = pneg %p263
      %p270 = scmp.eq.s32.totalorder %s24, 4
      %p271 = por %p269, %p270
      %p272 = scmp.ne.s32.totalorder %s264, %s267
      %p273 = scmp.eq.s32.totalorder %s24, 0
      %p274 = por %p272, %p273
      %p275 = scmp.ne.s32.totalorder %s264, %s267
      %p276 = scmp.eq.s32.totalorder %s29, 4
      %p277 = por %p275, %p276
      %p278 = scmp.ne.s32.totalorder %s267, %s268
      %p279 = scmp.eq.s32.totalorder %s29, 0
      %p280 = por %p278, %p279
      %p281 = scmp.ne.s32.totalorder %s267, %s268
      %p282 = scmp.eq.s32.totalorder %s30, 4
      %p283 = por %p281, %p282
      %p285 = scmp.ne.s32.totalorder %s268, %s284
      %p286 = scmp.eq.s32.totalorder %s30, 0
      %p287 = por %p285, %p286
      %s288 = ssub.s32 %s24, %s31
      %p289 = scmp.eq.s32.totalorder %s288, 0
      %s291 = sadd.s32 %s290, 1
      %s292 = scalar_select %p289, %s290, %s291
      %p295 = pneg %p289
      %p296 = scmp.eq.s32.totalorder %s24, 4
      %p297 = por %p295, %p296
      %p298 = scmp.ne.s32.totalorder %s290, %s293
      %p299 = scmp.eq.s32.totalorder %s24, 0
      %p300 = por %p298, %p299
      %p301 = scmp.ne.s32.totalorder %s290, %s293
      %p302 = scmp.eq.s32.totalorder %s29, 4
      %p303 = por %p301, %p302
      %p304 = scmp.ne.s32.totalorder %s293, %s294
      %p305 = scmp.eq.s32.totalorder %s29, 0
      %p306 = por %p304, %p305
      %p307 = scmp.ne.s32.totalorder %s293, %s294
      %p308 = scmp.eq.s32.totalorder %s30, 4
      %p309 = por %p307, %p308
      %p311 = scmp.ne.s32.totalorder %s294, %s310
      %p312 = scmp.eq.s32.totalorder %s30, 0
      %p313 = por %p311, %p312
      %s314 = ssub.s32 %s24, %s31
      %p315 = scmp.eq.s32.totalorder %s314, 0
      %s317 = sadd.s32 %s316, 1
      %s318 = scalar_select %p315, %s316, %s317
      %p321 = pneg %p315
      %p322 = scmp.eq.s32.totalorder %s24, 4
      %p323 = por %p321, %p322
      %p324 = scmp.ne.s32.totalorder %s316, %s319
      %p325 = scmp.eq.s32.totalorder %s24, 0
      %p326 = por %p324, %p325
      %p327 = scmp.ne.s32.totalorder %s316, %s319
      %p328 = scmp.eq.s32.totalorder %s29, 4
      %p329 = por %p327, %p328
      %p330 = scmp.ne.s32.totalorder %s319, %s320
      %p331 = scmp.eq.s32.totalorder %s29, 0
      %p332 = por %p330, %p331
      %p333 = scmp.ne.s32.totalorder %s319, %s320
      %p334 = scmp.eq.s32.totalorder %s30, 4
      %p335 = por %p333, %p334
      %p337 = scmp.ne.s32.totalorder %s320, %s336
      %p338 = scmp.eq.s32.totalorder %s30, 0
      %p339 = por %p337, %p338
      %s340 = ssub.s32 %s24, %s31
      %p341 = scmp.eq.s32.totalorder %s340, 0
      %s343 = sadd.s32 %s342, 1
      %s344 = scalar_select %p341, %s342, %s343
      %p347 = pneg %p341
      %p348 = scmp.eq.s32.totalorder %s24, 4
      %p349 = por %p347, %p348
      %p350 = scmp.ne.s32.totalorder %s342, %s345
      %p351 = scmp.eq.s32.totalorder %s24, 0
      %p352 = por %p350, %p351
      %p353 = scmp.ne.s32.totalorder %s342, %s345
      %p354 = scmp.eq.s32.totalorder %s29, 4
      %p355 = por %p353, %p354
      %p356 = scmp.ne.s32.totalorder %s345, %s346
      %p357 = scmp.eq.s32.totalorder %s29, 0
      %p358 = por %p356, %p357
      %p359 = scmp.ne.s32.totalorder %s345, %s346
      %p360 = scmp.eq.s32.totalorder %s30, 4
      %p361 = por %p359, %p360
      %p363 = scmp.ne.s32.totalorder %s346, %s362
      %p364 = scmp.eq.s32.totalorder %s30, 0
      %p365 = por %p363, %p364
      %s366 = ssub.s32 %s24, %s31
      %p367 = scmp.eq.s32.totalorder %s366, 0
      %s369 = sadd.s32 %s368, 1
      %s370 = scalar_select %p367, %s368, %s369
      %p373 = pneg %p367
      %p374 = scmp.eq.s32.totalorder %s24, 4
      %p375 = por %p373, %p374
      %p376 = scmp.ne.s32.totalorder %s368, %s371
      %p377 = scmp.eq.s32.totalorder %s24, 0
      %p378 = por %p376, %p377
      %p379 = scmp.ne.s32.totalorder %s368, %s371
      %p380 = scmp.eq.s32.totalorder %s29, 4
      %p381 = por %p379, %p380
      %p382 = scmp.ne.s32.totalorder %s371, %s372
      %p383 = scmp.eq.s32.totalorder %s29, 0
      %p384 = por %p382, %p383
      %p385 = scmp.ne.s32.totalorder %s371, %s372
      %p386 = scmp.eq.s32.totalorder %s30, 4
      %p387 = por %p385, %p386
      %p389 = scmp.ne.s32.totalorder %s372, %s388
      %p390 = scmp.eq.s32.totalorder %s30, 0
      %p391 = por %p389, %p390
      %s393 = sadd.s32 %s392, 1
      %p396 = scmp.eq.s32.totalorder %s24, 4
      %p397 = scmp.ne.s32.totalorder %s392, %s394
      %p398 = scmp.eq.s32.totalorder %s24, 0
      %p399 = por %p397, %p398
      %p400 = scmp.ne.s32.totalorder %s392, %s394
      %p401 = scmp.eq.s32.totalorder %s29, 4
      %p402 = por %p400, %p401
      %p403 = scmp.ne.s32.totalorder %s394, %s395
      %p404 = scmp.eq.s32.totalorder %s29, 0
      %p405 = por %p403, %p404
      %p406 = scmp.ne.s32.totalorder %s394, %s395
      %p407 = scmp.eq.s32.totalorder %s30, 4
      %p408 = por %p406, %p407
      %p410 = scmp.ne.s32.totalorder %s395, %s409
      %p411 = scmp.eq.s32.totalorder %s30, 0
      %p412 = por %p410, %p411
      %s414 = sadd.s32 %s413, 1
      %p417 = scmp.eq.s32.totalorder %s24, 4
      %p418 = scmp.ne.s32.totalorder %s413, %s415
      %p419 = scmp.eq.s32.totalorder %s24, 0
      %p420 = por %p418, %p419
      %p421 = scmp.ne.s32.totalorder %s413, %s415
      %p422 = scmp.eq.s32.totalorder %s29, 4
      %p423 = por %p421, %p422
      %p424 = scmp.ne.s32.totalorder %s415, %s416
      %p425 = scmp.eq.s32.totalorder %s29, 0
      %p426 = por %p424, %p425
      %p427 = scmp.ne.s32.totalorder %s415, %s416
      %p428 = scmp.eq.s32.totalorder %s30, 4
      %p429 = por %p427, %p428
      %p431 = scmp.ne.s32.totalorder %s416, %s430
      %p432 = scmp.eq.s32.totalorder %s30, 0
      %p433 = por %p431, %p432
      %s435 = sadd.s32 %s434, 1
      %p438 = scmp.eq.s32.totalorder %s24, 4
      %p439 = scmp.ne.s32.totalorder %s434, %s436
      %p440 = scmp.eq.s32.totalorder %s24, 0
      %p441 = por %p439, %p440
      %p442 = scmp.ne.s32.totalorder %s434, %s436
      %p443 = scmp.eq.s32.totalorder %s29, 4
      %p444 = por %p442, %p443
      %p445 = scmp.ne.s32.totalorder %s436, %s437
      %p446 = scmp.eq.s32.totalorder %s29, 0
      %p447 = por %p445, %p446
      %p448 = scmp.ne.s32.totalorder %s436, %s437
      %p449 = scmp.eq.s32.totalorder %s30, 4
      %p450 = por %p448, %p449
      %p452 = scmp.ne.s32.totalorder %s437, %s451
      %p453 = scmp.eq.s32.totalorder %s30, 0
      %p454 = por %p452, %p453
      %p455 = scmp.le.s32.totalorder 1, %s24
      %p456 = scmp.lt.s32.totalorder %s24, 6
      %p457 = pnand %p455, %p456
      %p458 = pneg %p457
      // Predicated region
      $region9: #{gnn_forward.1} parent=5 // pred_check
        _
      $region10: #{gnn_forward.1} parent=5 // pred_check_branch
        %460 = sbr.rel (%p457) target = $region12
      $region11: #{gnn_forward.1} parent=5 // pred_region
        %s461 = ssub.s32 %s24, 1
        // Predicated region
        $region13: #{gnn_forward.1} parent=11 // pred_check
          %p462 = pneg %p45
        $region14: #{gnn_forward.1} parent=11 // pred_check_branch
          %464 = sbr.rel (%p462) target = $region16
        $region15: #{gnn_forward.1} parent=11 // pred_region
          _
        $region16: #{gnn_forward.1} parent=11 // pred_fallthru
          _
        // Predicated region
        $region17: #{gnn_forward.1} parent=11 // pred_check
          %p465 = pneg %p66
        $region18: #{gnn_forward.1} parent=11 // pred_check_branch
          %467 = sbr.rel (%p465) target = $region20
        $region19: #{gnn_forward.1} parent=11 // pred_region
          _
        $region20: #{gnn_forward.1} parent=11 // pred_fallthru
          _
        // Predicated region
        $region21: #{gnn_forward.1} parent=11 // pred_check
          %p468 = pneg %p87
        $region22: #{gnn_forward.1} parent=11 // pred_check_branch
          %470 = sbr.rel (%p468) target = $region24
        $region23: #{gnn_forward.1} parent=11 // pred_region
          _
        $region24: #{gnn_forward.1} parent=11 // pred_fallthru
          _
        // Predicated region
        $region25: #{gnn_forward.1} parent=11 // pred_check
          %p471 = pneg %p108
        $region26: #{gnn_forward.1} parent=11 // pred_check_branch
          %473 = sbr.rel (%p471) target = $region28
        $region27: #{gnn_forward.1} parent=11 // pred_region
          _
        $region28: #{gnn_forward.1} parent=11 // pred_fallthru
          _
        // Predicated region
        $region29: #{gnn_forward.1} parent=11 // pred_check
          %p474 = pneg %p129
        $region30: #{gnn_forward.1} parent=11 // pred_check_branch
          %476 = sbr.rel (%p474) target = $region32
        $region31: #{gnn_forward.1} parent=11 // pred_region
          _
        $region32: #{gnn_forward.1} parent=11 // pred_fallthru
          _
        // Predicated region
        $region33: #{gnn_forward.1} parent=11 // pred_check
          %p477 = pneg %p150
        $region34: #{gnn_forward.1} parent=11 // pred_check_branch
          %479 = sbr.rel (%p477) target = $region36
        $region35: #{gnn_forward.1} parent=11 // pred_region
          _
        $region36: #{gnn_forward.1} parent=11 // pred_fallthru
          _
        // Predicated region
        $region37: #{gnn_forward.1} parent=11 // pred_check
          %p480 = pneg %p405
        $region38: #{gnn_forward.1} parent=11 // pred_check_branch
          %482 = sbr.rel (%p480) target = $region40
        $region39: #{gnn_forward.1} parent=11 // pred_region
          _
        $region40: #{gnn_forward.1} parent=11 // pred_fallthru
          _
        // Predicated region
        $region41: #{gnn_forward.1} parent=11 // pred_check
          %p483 = pneg %p426
        $region42: #{gnn_forward.1} parent=11 // pred_check_branch
          %485 = sbr.rel (%p483) target = $region44
        $region43: #{gnn_forward.1} parent=11 // pred_region
          _
        $region44: #{gnn_forward.1} parent=11 // pred_fallthru
          _
      $region12: #{gnn_forward.1} parent=5 // pred_fallthru
        _
      %p486 = scmp.lt.s32.totalorder %s24, 5
      // Predicated region
      $region45: #{gnn_forward.1} parent=5 // pred_check
        %p487 = pneg %p486
      $region46: #{gnn_forward.1} parent=5 // pred_check_branch
        %489 = sbr.rel (%p487) target = $region48
      $region47: #{gnn_forward.1} parent=5 // pred_region
        // Predicated region
        $region49: #{gnn_forward.1} parent=47 // pred_check
          %p490 = pneg %p170
        $region50: #{gnn_forward.1} parent=47 // pred_check_branch
          %492 = sbr.rel (%p490) target = $region52
        $region51: #{gnn_forward.1} parent=47 // pred_region
          %p493 = scmp.lt.s32.totalorder %s24, 4
          %s494 = scalar_select %p493, %s24, 4
          %s495 = smul.addr %s494, 16
          %s496 = smul.addr %s495, 4
          %s497 = scalar_lea.vmem %s6, %s496
        $region52: #{gnn_forward.1} parent=47 // pred_fallthru
          _
        // Predicated region
        $region53: #{gnn_forward.1} parent=47 // pred_check
          %p498 = pneg %p196
        $region54: #{gnn_forward.1} parent=47 // pred_check_branch
          %500 = sbr.rel (%p498) target = $region56
        $region55: #{gnn_forward.1} parent=47 // pred_region
          %p501 = scmp.lt.s32.totalorder %s24, 4
          %s502 = scalar_select %p501, %s24, 4
          %s503 = smul.addr %s502, 32
          %s504 = smul.addr %s503, 4
          %s505 = scalar_lea.vmem %s7, %s504
        $region56: #{gnn_forward.1} parent=47 // pred_fallthru
          _
        // Predicated region
        $region57: #{gnn_forward.1} parent=47 // pred_check
          %p506 = pneg %p222
        $region58: #{gnn_forward.1} parent=47 // pred_check_branch
          %508 = sbr.rel (%p506) target = $region60
        $region59: #{gnn_forward.1} parent=47 // pred_region
          %p509 = scmp.lt.s32.totalorder %s24, 4
          %s510 = scalar_select %p509, %s24, 4
          %s511 = smul.addr %s510, 2
          %s512 = scalar_lea.vmem %s8, %s511
        $region60: #{gnn_forward.1} parent=47 // pred_fallthru
          _
        // Predicated region
        $region61: #{gnn_forward.1} parent=47 // pred_check
          %p513 = pneg %p248
        $region62: #{gnn_forward.1} parent=47 // pred_check_branch
          %515 = sbr.rel (%p513) target = $region64
        $region63: #{gnn_forward.1} parent=47 // pred_region
          %p516 = scmp.lt.s32.totalorder %s24, 4
          %s517 = scalar_select %p516, %s24, 4
          %s518 = smul.addr %s517, 32
          %s519 = smul.addr %s518, 4
          %s520 = scalar_lea.vmem %s9, %s519
        $region64: #{gnn_forward.1} parent=47 // pred_fallthru
          _
        // Predicated region
        $region65: #{gnn_forward.1} parent=47 // pred_check
          %p521 = pneg %p274
        $region66: #{gnn_forward.1} parent=47 // pred_check_branch
          %523 = sbr.rel (%p521) target = $region68
        $region67: #{gnn_forward.1} parent=47 // pred_region
          %p524 = scmp.lt.s32.totalorder %s24, 4
          %s525 = scalar_select %p524, %s24, 4
          %s526 = scalar_lea.vmem %s10, %s525
        $region68: #{gnn_forward.1} parent=47 // pred_fallthru
          _
        // Predicated region
        $region69: #{gnn_forward.1} parent=47 // pred_check
          %p527 = pneg %p300
        $region70: #{gnn_forward.1} parent=47 // pred_check_branch
          %529 = sbr.rel (%p527) target = $region72
        $region71: #{gnn_forward.1} parent=47 // pred_region
          %p530 = scmp.lt.s32.totalorder %s24, 4
          %s531 = scalar_select %p530, %s24, 4
          %s532 = smul.addr %s531, 32
          %s533 = smul.addr %s532, 4
          %s534 = scalar_lea.vmem %s11, %s533
        $region72: #{gnn_forward.1} parent=47 // pred_fallthru
          _
        // Predicated region
        $region73: #{gnn_forward.1} parent=47 // pred_check
          %p535 = pneg %p326
        $region74: #{gnn_forward.1} parent=47 // pred_check_branch
          %537 = sbr.rel (%p535) target = $region76
        $region75: #{gnn_forward.1} parent=47 // pred_region
          %p538 = scmp.lt.s32.totalorder %s24, 4
          %s539 = scalar_select %p538, %s24, 4
          %s540 = smul.addr %s539, 2
          %s541 = scalar_lea.vmem %s12, %s540
        $region76: #{gnn_forward.1} parent=47 // pred_fallthru
          _
        // Predicated region
        $region77: #{gnn_forward.1} parent=47 // pred_check
          %p542 = pneg %p352
        $region78: #{gnn_forward.1} parent=47 // pred_check_branch
          %544 = sbr.rel (%p542) target = $region80
        $region79: #{gnn_forward.1} parent=47 // pred_region
          %p545 = scmp.lt.s32.totalorder %s24, 4
          %s546 = scalar_select %p545, %s24, 4
          %s547 = smul.addr %s546, 32
          %s548 = smul.addr %s547, 4
          %s549 = scalar_lea.vmem %s13, %s548
        $region80: #{gnn_forward.1} parent=47 // pred_fallthru
          _
        // Predicated region
        $region81: #{gnn_forward.1} parent=47 // pred_check
          %p550 = pneg %p378
        $region82: #{gnn_forward.1} parent=47 // pred_check_branch
          %552 = sbr.rel (%p550) target = $region84
        $region83: #{gnn_forward.1} parent=47 // pred_region
          %p553 = scmp.lt.s32.totalorder %s24, 4
          %s554 = scalar_select %p553, %s24, 4
          %s555 = scalar_lea.vmem %s14, %s554
        $region84: #{gnn_forward.1} parent=47 // pred_fallthru
          _
      $region48: #{gnn_forward.1} parent=5 // pred_fallthru
        _
      %p556 = scmp.le.s32.totalorder 1, %s24
      %p557 = scmp.lt.s32.totalorder %s24, 6
      %p558 = pnand %p556, %p557
      %p559 = pneg %p558
      // Predicated region
      $region85: #{gnn_forward.1} parent=5 // pred_check
        _
      $region86: #{gnn_forward.1} parent=5 // pred_check_branch
        %561 = sbr.rel (%p558) target = $region88
      $region87: #{gnn_forward.1} parent=5 // pred_region
        %s562 = ssub.s32 %s24, 1
        %p563 = pneg %p45
        %p564 = pneg %p42
        %p565 = pneg %p66
        %p566 = pneg %p63
        %p567 = pneg %p87
        %p568 = pneg %p84
        %p569 = pneg %p108
        %p570 = pneg %p105
        %p571 = pneg %p129
        %p572 = pneg %p126
        %p573 = pneg %p150
        %p574 = pneg %p147
        %p575 = scmp.lt.s32.totalorder %s29, 4
        %s576 = scalar_select %p575, %s29, 4
        %s577 = smul.addr %s576, 16
        %s578 = smul.addr %s577, 4
        %s579 = scalar_lea.vmem %s6, %s578
        %p580 = pneg %p176
        %p581 = pneg %p173
        %p582 = scmp.lt.s32.totalorder %s29, 4
        %s583 = scalar_select %p582, %s29, 4
        %s584 = smul.addr %s583, 32
        %s585 = smul.addr %s584, 4
        %s586 = scalar_lea.vmem %s7, %s585
        %p587 = pneg %p202
        %p588 = pneg %p199
        %p589 = scmp.lt.s32.totalorder %s29, 4
        %s590 = scalar_select %p589, %s29, 4
        %s591 = smul.addr %s590, 2
        %s592 = scalar_lea.vmem %s8, %s591
        %p593 = pneg %p228
        %p594 = pneg %p225
        %p595 = scmp.lt.s32.totalorder %s29, 4
        %s596 = scalar_select %p595, %s29, 4
        %s597 = smul.addr %s596, 32
        %s598 = smul.addr %s597, 4
        %s599 = scalar_lea.vmem %s9, %s598
        %p600 = pneg %p254
        %p601 = pneg %p251
        %p602 = scmp.lt.s32.totalorder %s29, 4
        %s603 = scalar_select %p602, %s29, 4
        %s604 = scalar_lea.vmem %s10, %s603
        %p605 = pneg %p280
        %p606 = pneg %p277
        %p607 = scmp.lt.s32.totalorder %s29, 4
        %s608 = scalar_select %p607, %s29, 4
        %s609 = smul.addr %s608, 32
        %s610 = smul.addr %s609, 4
        %s611 = scalar_lea.vmem %s11, %s610
        %p612 = pneg %p306
        %p613 = pneg %p303
        %p614 = scmp.lt.s32.totalorder %s29, 4
        %s615 = scalar_select %p614, %s29, 4
        %s616 = smul.addr %s615, 2
        %s617 = scalar_lea.vmem %s12, %s616
        %p618 = pneg %p332
        %p619 = pneg %p329
        %p620 = scmp.lt.s32.totalorder %s29, 4
        %s621 = scalar_select %p620, %s29, 4
        %s622 = smul.addr %s621, 32
        %s623 = smul.addr %s622, 4
        %s624 = scalar_lea.vmem %s13, %s623
        %p625 = pneg %p358
        %p626 = pneg %p355
        %p627 = scmp.lt.s32.totalorder %s29, 4
        %s628 = scalar_select %p627, %s29, 4
        %s629 = scalar_lea.vmem %s14, %s628
        %p630 = pneg %p384
        %p631 = pneg %p381
        %p632 = pneg %p405
        %p633 = pneg %p402
        %p634 = pneg %p426
        %p635 = pneg %p423
        %p636 = pneg %p447
        %p637 = pneg %p444
        %p638 = scmp.lt.s32.totalorder %s29, 4
        %s639 = scalar_select %p638, %s29, 4
        %s640 = smul.addr %s639, 16
        %s641 = smul.addr %s640, 4
        %s642 = scalar_lea.vmem %s6, %s641
        %p643 = scmp.lt.s32.totalorder %s29, 4
        %s644 = scalar_select %p643, %s29, 4
        %s645 = smul.addr %s644, 32
        %s646 = smul.addr %s645, 4
        %s647 = scalar_lea.vmem %s7, %s646
        %p648 = scmp.lt.s32.totalorder %s29, 4
        %s649 = scalar_select %p648, %s29, 4
        %s650 = smul.addr %s649, 2
        %s651 = scalar_lea.vmem %s8, %s650
        %p652 = scmp.lt.s32.totalorder %s29, 4
        %s653 = scalar_select %p652, %s29, 4
        %s654 = smul.addr %s653, 32
        %s655 = smul.addr %s654, 4
        %s656 = scalar_lea.vmem %s9, %s655
        %p657 = scmp.lt.s32.totalorder %s29, 4
        %s658 = scalar_select %p657, %s29, 4
        %s659 = scalar_lea.vmem %s10, %s658
        %p660 = scmp.lt.s32.totalorder %s29, 4
        %s661 = scalar_select %p660, %s29, 4
        %s662 = smul.addr %s661, 32
        %s663 = smul.addr %s662, 4
        %s664 = scalar_lea.vmem %s11, %s663
        %p665 = scmp.lt.s32.totalorder %s29, 4
        %s666 = scalar_select %p665, %s29, 4
        %s667 = smul.addr %s666, 2
        %s668 = scalar_lea.vmem %s12, %s667
        %p669 = scmp.lt.s32.totalorder %s29, 4
        %s670 = scalar_select %p669, %s29, 4
        %s671 = smul.addr %s670, 32
        %s672 = smul.addr %s671, 4
        %s673 = scalar_lea.vmem %s13, %s672
        %p674 = scmp.lt.s32.totalorder %s29, 4
        %s675 = scalar_select %p674, %s29, 4
        %s676 = scalar_lea.vmem %s14, %s675
        %p678 = scmp.eq.s32.totalorder %s29, 0
        // Predicated region
        $region89: #{gnn_forward.1} parent=87 // pred_check
          %p679 = pneg %p678
        $region90: #{gnn_forward.1} parent=87 // pred_check_branch
          %681 = sbr.rel (%p679) target = $region92
        $region91: #{gnn_forward.1} parent=87 // pred_region
          %v682 = vld [vmem:[%s0] sm:$0xf]
          %v683 = vld [vmem:[%s0 + $0x4] sm:$0xf]
          %v684 = vld [vmem:[%s0 + $0x8] sm:$0xf]
          %v685 = vld [vmem:[%s0 + $0xc] sm:$0xf]
          %v686 = vld [vmem:[%s0 + $0x10] sm:$0xf]
          %v687 = vld [vmem:[%s0 + $0x14] sm:$0xf]
          %v688 = vld [vmem:[%s0 + $0x18] sm:$0xf]
          %v689 = vld [vmem:[%s0 + $0x1c] sm:$0xf]
          %v690 = vunpack.c.l.bf16 %v682
          %v691 = vunpack.c.l.bf16 %v683
          %v692 = vunpack.c.l.bf16 %v684
          %v693 = vunpack.c.l.bf16 %v685
          %v694 = vunpack.c.l.bf16 %v686
          %v695 = vunpack.c.l.bf16 %v687
          %v696 = vunpack.c.l.bf16 %v688
          %v697 = vunpack.c.l.bf16 %v689
          %698 = vst [vmem:[#allocation2] sm:$0xff] %v690
          %699 = vst [vmem:[#allocation2 + $0x8] sm:$0xff] %v691
          %700 = vst [vmem:[#allocation2 + $0x10] sm:$0xff] %v692
          %701 = vst [vmem:[#allocation2 + $0x18] sm:$0xff] %v693
          %702 = vst [vmem:[#allocation2 + $0x20] sm:$0xff] %v694
          %703 = vst [vmem:[#allocation2 + $0x28] sm:$0xff] %v695
          %704 = vst [vmem:[#allocation2 + $0x30] sm:$0xff] %v696
          %705 = vst [vmem:[#allocation2 + $0x38] sm:$0xff] %v697
          %706 = vst [vmem:[#allocation3] sm:$0xf] 0.0
          %vm707 = vcmask 60416
          %708 = vst.msk [vmem:[#allocation4] sm:$0xf] %vm707, 0.0
        $region92: #{gnn_forward.1} parent=87 // pred_fallthru
          _
        %v709 = vld [vmem:[#allocation2] sm:$0xff]
        %v710 = vld [vmem:[#allocation2 + $0x8] sm:$0xff]
        %v711 = vld [vmem:[#allocation2 + $0x10] sm:$0xff]
        %v712 = vld [vmem:[#allocation2 + $0x18] sm:$0xff]
        %v713 = vld [vmem:[#allocation2 + $0x20] sm:$0xff]
        %v714 = vld [vmem:[#allocation2 + $0x28] sm:$0xff]
        %v715 = vld [vmem:[#allocation2 + $0x30] sm:$0xff]
        %v716 = vld [vmem:[#allocation2 + $0x38] sm:$0xff]
        %v717 = vld [vmem:[%s3] sm:$0xf]
        %v718 = vld [vmem:[%s3 + $0x4] sm:$0xf]
        %v719 = vld [vmem:[%s3 + $0x8] sm:$0xf]
        %v720 = vld [vmem:[%s3 + $0xc] sm:$0xf]
        %v721 = vld [vmem:[%s3 + $0x10] sm:$0xf]
        %v722 = vld [vmem:[%s3 + $0x14] sm:$0xf]
        %v723 = vld [vmem:[%s3 + $0x18] sm:$0xf]
        %v724 = vld [vmem:[%s3 + $0x1c] sm:$0xf]
        %v725 = vld [vmem:[#allocation3] sm:$0xf]
        %v726 = vpack.c.bf16 %v725, %v725
        %v735 = vunpack.c.l.b16 %v717
        %v736 = vunpack.c.l.b16 %v718
        %v737 = vunpack.c.l.b16 %v719
        %v738 = vunpack.c.l.b16 %v720
        %v739 = vunpack.c.l.b16 %v721
        %v740 = vunpack.c.l.b16 %v722
        %v741 = vunpack.c.l.b16 %v723
        %v742 = vunpack.c.l.b16 %v724
        %v743 = vpack.c.b16 %v736, %v735
        %v744 = vpack.c.b16 %v738, %v737
        %v745 = vpack.c.b16 %v740, %v739
        %v746 = vpack.c.b16 %v742, %v741
        %vm747 = vcmask 31744
        %v749 = vsel %vm747, %v743, 0
        %v752 = vsel %vm747, %v744, 0
        %v755 = vsel %vm747, %v745, 0
        %v758 = vsel %vm747, %v746, 0
        %vm760 = vcmask 1041408
        %v762 = vsel %vm760, %v726, 0
        %764 = vmatpush.bf16.msra.mxu0 0
        %765 = vmatpush.bf16.msra.mxu0 0
        %766 = vmatpush.bf16.msra.mxu0 0
        %767 = vmatpush.bf16.msra.mxu0 0
        %768 = vmatpush.bf16.msra.mxu0 0
        %769 = vmatpush.bf16.msra.mxu0 0
        %770 = vmatpush.bf16.msra.mxu0 0
        %771 = vmatpush.bf16.msra.mxu0 %v762
        %772 = vmatmul.bf16.gmra.mxu0 %v749
        %v773 = vpop.f32.mrf.mxu0
        %v774 = vadd.f32 0.0, %v773
        %v775 = vpop.f32.mrf.mxu0
        %v776 = vadd.f32 0.0, %v775
        %777 = vmatmul.bf16.gmra.mxu0 %v752
        %v778 = vpop.f32.mrf.mxu0
        %v779 = vadd.f32 0.0, %v778
        %v780 = vpop.f32.mrf.mxu0
        %v781 = vadd.f32 0.0, %v780
        %782 = vmatmul.bf16.gmra.mxu0 %v755
        %v783 = vpop.f32.mrf.mxu0
        %v784 = vadd.f32 0.0, %v783
        %v785 = vpop.f32.mrf.mxu0
        %v786 = vadd.f32 0.0, %v785
        %787 = vmatmul.bf16.gmra.mxu0 %v758
        %v788 = vpop.f32.mrf.mxu0
        %v789 = vadd.f32 0.0, %v788
        %v790 = vpop.f32.mrf.mxu0
        %v791 = vadd.f32 0.0, %v790
        %792 = vdwg.mxu0
        %v793 = vadd.f32 %v709, %v774
        %v794 = vadd.f32 %v710, %v776
        %v795 = vadd.f32 %v711, %v779
        %v796 = vadd.f32 %v712, %v781
        %v797 = vadd.f32 %v713, %v784
        %v798 = vadd.f32 %v714, %v786
        %v799 = vadd.f32 %v715, %v789
        %v800 = vadd.f32 %v716, %v791
        %v801 = vpack.c.bf16 %v794, %v793
        %v802 = vpack.c.bf16 %v796, %v795
        %v803 = vpack.c.bf16 %v798, %v797
        %v804 = vpack.c.bf16 %v800, %v799
        %v805 = vld [vmem:[%s1] sm:$0xf]
        %v806 = vld [vmem:[%s1 + $0x4] sm:$0xf]
        %v807 = vld [vmem:[%s1 + $0x8] sm:$0xf]
        %v808 = vld [vmem:[%s1 + $0xc] sm:$0xf]
        %v809 = vld [vmem:[%s1 + $0x10] sm:$0xf]
        %v810 = vld [vmem:[%s1 + $0x14] sm:$0xf]
        %v811 = vld [vmem:[%s1 + $0x18] sm:$0xf]
        %v812 = vld [vmem:[%s1 + $0x1c] sm:$0xf]
        %v813 = vld [vmem:[%s1 + $0x20] sm:$0xf]
        %v814 = vld [vmem:[%s1 + $0x24] sm:$0xf]
        %v815 = vld [vmem:[%s1 + $0x28] sm:$0xf]
        %v816 = vld [vmem:[%s1 + $0x2c] sm:$0xf]
        %v817 = vld [vmem:[%s1 + $0x30] sm:$0xf]
        %v818 = vld [vmem:[%s1 + $0x34] sm:$0xf]
        %v819 = vld [vmem:[%s1 + $0x38] sm:$0xf]
        %v820 = vld [vmem:[%s1 + $0x3c] sm:$0xf]
        %v821 = vld [vmem:[%s642] sm:$0xf]
        %v822 = vld [vmem:[%s642 + $0x4] sm:$0xf]
        %v823 = vld [vmem:[%s642 + $0x8] sm:$0xf]
        %v824 = vld [vmem:[%s642 + $0xc] sm:$0xf]
        %v825 = vld [vmem:[%s642 + $0x10] sm:$0xf]
        %v826 = vld [vmem:[%s642 + $0x14] sm:$0xf]
        %v827 = vld [vmem:[%s642 + $0x18] sm:$0xf]
        %v828 = vld [vmem:[%s642 + $0x1c] sm:$0xf]
        %v829 = vld [vmem:[%s642 + $0x20] sm:$0xf]
        %v830 = vld [vmem:[%s642 + $0x24] sm:$0xf]
        %v831 = vld [vmem:[%s642 + $0x28] sm:$0xf]
        %v832 = vld [vmem:[%s642 + $0x2c] sm:$0xf]
        %v833 = vld [vmem:[%s642 + $0x30] sm:$0xf]
        %v834 = vld [vmem:[%s642 + $0x34] sm:$0xf]
        %v835 = vld [vmem:[%s642 + $0x38] sm:$0xf]
        %v836 = vld [vmem:[%s642 + $0x3c] sm:$0xf]
        %v837 = vunpack.c.l.bf16 %v821
        %v838 = vunpack.c.l.bf16 %v822
        %v839 = vunpack.c.l.bf16 %v823
        %v840 = vunpack.c.l.bf16 %v824
        %v841 = vunpack.c.l.bf16 %v825
        %v842 = vunpack.c.l.bf16 %v826
        %v843 = vunpack.c.l.bf16 %v827
        %v844 = vunpack.c.l.bf16 %v828
        %v845 = vunpack.c.l.bf16 %v829
        %v846 = vunpack.c.l.bf16 %v830
        %v847 = vunpack.c.l.bf16 %v831
        %v848 = vunpack.c.l.bf16 %v832
        %v849 = vunpack.c.l.bf16 %v833
        %v850 = vunpack.c.l.bf16 %v834
        %v851 = vunpack.c.l.bf16 %v835
        %v852 = vunpack.c.l.bf16 %v836
        %v869 = vunpack.c.l.b16 %v805
        %v870 = vunpack.c.l.b16 %v806
        %v871 = vunpack.c.l.b16 %v807
        %v872 = vunpack.c.l.b16 %v808
        %v873 = vunpack.c.l.b16 %v809
        %v874 = vunpack.c.l.b16 %v810
        %v875 = vunpack.c.l.b16 %v811
        %v876 = vunpack.c.l.b16 %v812
        %v877 = vunpack.c.l.b16 %v813
        %v878 = vunpack.c.l.b16 %v814
        %v879 = vunpack.c.l.b16 %v815
        %v880 = vunpack.c.l.b16 %v816
        %v881 = vunpack.c.l.b16 %v817
        %v882 = vunpack.c.l.b16 %v818
        %v883 = vunpack.c.l.b16 %v819
        %v884 = vunpack.c.l.b16 %v820
        %v885 = vpack.c.b16 %v870, %v869
        %v886 = vpack.c.b16 %v872, %v871
        %v887 = vpack.c.b16 %v874, %v873
        %v888 = vpack.c.b16 %v876, %v875
        %v889 = vpack.c.b16 %v878, %v877
        %v890 = vpack.c.b16 %v880, %v879
        %v891 = vpack.c.b16 %v882, %v881
        %v892 = vpack.c.b16 %v884, %v883
        %vm893 = vcmask 523264
        %v895 = vsel %vm893, %v885, 0
        %v898 = vsel %vm893, %v886, 0
        %v901 = vsel %vm893, %v887, 0
        %v904 = vsel %vm893, %v888, 0
        %v907 = vsel %vm893, %v889, 0
        %v910 = vsel %vm893, %v890, 0
        %v913 = vsel %vm893, %v891, 0
        %v916 = vsel %vm893, %v892, 0
        %918 = vmatpush.bf16.msra.mxu0 0
        %919 = vmatpush.bf16.msra.mxu0 0
        %920 = vmatpush.bf16.msra.mxu0 0
        %921 = vmatpush.bf16.msra.mxu0 0
        %922 = vmatpush.bf16.msra.mxu0 %v804
        %923 = vmatpush.bf16.msra.mxu0 %v803
        %924 = vmatpush.bf16.msra.mxu0 %v802
        %925 = vmatpush.bf16.msra.mxu0 %v801
        %926 = vmatmul.bf16.gmra.mxu0 %v895
        %v927 = vpop.f32.mrf.mxu0
        %v928 = vadd.f32 %v837, %v927
        %v929 = vpop.f32.mrf.mxu0
        %v930 = vadd.f32 %v838, %v929
        %931 = vmatmul.bf16.gmra.mxu0 %v898
        %v932 = vpop.f32.mrf.mxu0
        %v933 = vadd.f32 %v839, %v932
        %v934 = vpop.f32.mrf.mxu0
        %v935 = vadd.f32 %v840, %v934
        %936 = vmatmul.bf16.gmra.mxu0 %v901
        %v937 = vpop.f32.mrf.mxu0
        %v938 = vadd.f32 %v841, %v937
        %v939 = vpop.f32.mrf.mxu0
        %v940 = vadd.f32 %v842, %v939
        %941 = vmatmul.bf16.gmra.mxu0 %v904
        %v942 = vpop.f32.mrf.mxu0
        %v943 = vadd.f32 %v843, %v942
        %v944 = vpop.f32.mrf.mxu0
        %v945 = vadd.f32 %v844, %v944
        %946 = vmatmul.bf16.gmra.mxu0 %v907
        %v947 = vpop.f32.mrf.mxu0
        %v948 = vadd.f32 %v845, %v947
        %v949 = vpop.f32.mrf.mxu0
        %v950 = vadd.f32 %v846, %v949
        %951 = vmatmul.bf16.gmra.mxu0 %v910
        %v952 = vpop.f32.mrf.mxu0
        %v953 = vadd.f32 %v847, %v952
        %v954 = vpop.f32.mrf.mxu0
        %v955 = vadd.f32 %v848, %v954
        %956 = vmatmul.bf16.gmra.mxu0 %v913
        %v957 = vpop.f32.mrf.mxu0
        %v958 = vadd.f32 %v849, %v957
        %v959 = vpop.f32.mrf.mxu0
        %v960 = vadd.f32 %v850, %v959
        %961 = vmatmul.bf16.gmra.mxu0 %v916
        %v962 = vpop.f32.mrf.mxu0
        %v963 = vadd.f32 %v851, %v962
        %v964 = vpop.f32.mrf.mxu0
        %v965 = vadd.f32 %v852, %v964
        %966 = vdwg.mxu0
        %v967 = vmax.f32 %v928, 0.0
        %v968 = vmax.f32 %v930, 0.0
        %v969 = vmax.f32 %v933, 0.0
        %v970 = vmax.f32 %v935, 0.0
        %v971 = vmax.f32 %v938, 0.0
        %v972 = vmax.f32 %v940, 0.0
        %v973 = vmax.f32 %v943, 0.0
        %v974 = vmax.f32 %v945, 0.0
        %v975 = vmax.f32 %v948, 0.0
        %v976 = vmax.f32 %v950, 0.0
        %v977 = vmax.f32 %v953, 0.0
        %v978 = vmax.f32 %v955, 0.0
        %v979 = vmax.f32 %v958, 0.0
        %v980 = vmax.f32 %v960, 0.0
        %v981 = vmax.f32 %v963, 0.0
        %v982 = vmax.f32 %v965, 0.0
        %v983 = vld [vmem:[%s2] sm:$0xf]
        %v984 = vld [vmem:[%s2 + $0x4] sm:$0xf]
        %v985 = vld [vmem:[%s2 + $0x8] sm:$0xf]
        %v986 = vld [vmem:[%s2 + $0xc] sm:$0xf]
        %v987 = vld [vmem:[%s2 + $0x10] sm:$0xf]
        %v988 = vld [vmem:[%s2 + $0x14] sm:$0xf]
        %v989 = vld [vmem:[%s2 + $0x18] sm:$0xf]
        %v990 = vld [vmem:[%s2 + $0x1c] sm:$0xf]
        %v991 = vpack.c.bf16 %v968, %v967
        %v992 = vpack.c.bf16 %v970, %v969
        %v993 = vpack.c.bf16 %v972, %v971
        %v994 = vpack.c.bf16 %v974, %v973
        %v995 = vpack.c.bf16 %v976, %v975
        %v996 = vpack.c.bf16 %v978, %v977
        %v997 = vpack.c.bf16 %v980, %v979
        %v998 = vpack.c.bf16 %v982, %v981
        %v1007 = vunpack.c.l.b16 %v983
        %v1008 = vunpack.c.l.b16 %v984
        %v1009 = vunpack.c.l.b16 %v985
        %v1010 = vunpack.c.l.b16 %v986
        %v1011 = vunpack.c.l.b16 %v987
        %v1012 = vunpack.c.l.b16 %v988
        %v1013 = vunpack.c.l.b16 %v989
        %v1014 = vunpack.c.l.b16 %v990
        %v1015 = vpack.c.b16 %v1008, %v1007
        %v1016 = vpack.c.b16 %v1010, %v1009
        %v1017 = vpack.c.b16 %v1012, %v1011
        %v1018 = vpack.c.b16 %v1014, %v1013
        %1023 = vmatpush.bf16.msra.mxu0 %v998
        %1024 = vmatpush.bf16.msra.mxu0 %v997
        %1025 = vmatpush.bf16.msra.mxu0 %v996
        %1026 = vmatpush.bf16.msra.mxu0 %v995
        %1027 = vmatpush.bf16.msra.mxu0 %v994
        %1028 = vmatpush.bf16.msra.mxu0 %v993
        %1029 = vmatpush.bf16.msra.mxu0 %v992
        %1030 = vmatpush.bf16.msra.mxu0 %v991
        %1031 = vmatmul.bf16.gmra.mxu0 %v1015
        %v1032 = vpop.f32.mrf.mxu0
        %v1033 = vadd.f32 0.0, %v1032
        %v1034 = vpop.f32.mrf.mxu0
        %v1035 = vadd.f32 0.0, %v1034
        %1036 = vmatmul.bf16.gmra.mxu0 %v1016
        %v1037 = vpop.f32.mrf.mxu0
        %v1038 = vadd.f32 0.0, %v1037
        %v1039 = vpop.f32.mrf.mxu0
        %v1040 = vadd.f32 0.0, %v1039
        %1041 = vmatmul.bf16.gmra.mxu0 %v1017
        %v1042 = vpop.f32.mrf.mxu0
        %v1043 = vadd.f32 0.0, %v1042
        %v1044 = vpop.f32.mrf.mxu0
        %v1045 = vadd.f32 0.0, %v1044
        %1046 = vmatmul.bf16.gmra.mxu0 %v1018
        %v1047 = vpop.f32.mrf.mxu0
        %v1048 = vadd.f32 0.0, %v1047
        %v1049 = vpop.f32.mrf.mxu0
        %v1050 = vadd.f32 0.0, %v1049
        %1051 = vdwg.mxu0
        %v1052 = vadd.f32 %v793, %v1033
        %v1053 = vadd.f32 %v794, %v1035
        %v1054 = vadd.f32 %v795, %v1038
        %v1055 = vadd.f32 %v796, %v1040
        %v1056 = vadd.f32 %v797, %v1043
        %v1057 = vadd.f32 %v798, %v1045
        %v1058 = vadd.f32 %v799, %v1048
        %v1059 = vadd.f32 %v800, %v1050
        %v1060 = vpack.c.bf16 %v1053, %v1052
        %v1061 = vpack.c.bf16 %v1055, %v1054
        %v1062 = vpack.c.bf16 %v1057, %v1056
        %v1063 = vpack.c.bf16 %v1059, %v1058
        %v1064 = vld [vmem:[%s647] sm:$0xff]
        %v1065 = vld [vmem:[%s647 + $0x8] sm:$0xff]
        %v1066 = vld [vmem:[%s647 + $0x10] sm:$0xff]
        %v1067 = vld [vmem:[%s647 + $0x18] sm:$0xff]
        %v1068 = vld [vmem:[%s647 + $0x20] sm:$0xff]
        %v1069 = vld [vmem:[%s647 + $0x28] sm:$0xff]
        %v1070 = vld [vmem:[%s647 + $0x30] sm:$0xff]
        %v1071 = vld [vmem:[%s647 + $0x38] sm:$0xff]
        %v1072 = vld [vmem:[%s647 + $0x40] sm:$0xff]
        %v1073 = vld [vmem:[%s647 + $0x48] sm:$0xff]
        %v1074 = vld [vmem:[%s647 + $0x50] sm:$0xff]
        %v1075 = vld [vmem:[%s647 + $0x58] sm:$0xff]
        %v1076 = vld [vmem:[%s647 + $0x60] sm:$0xff]
        %v1077 = vld [vmem:[%s647 + $0x68] sm:$0xff]
        %v1078 = vld [vmem:[%s647 + $0x70] sm:$0xff]
        %v1079 = vld [vmem:[%s647 + $0x78] sm:$0xff]
        %v1080 = vld [vmem:[%s651] sm:$0x3]
        %v1082 = vperm.slane %v1080, 0
        %v1083 = vperm.slane %v1080, 1
        %v1102 = vunpack.c.l.b16 %v1064
        %v1103 = vunpack.c.h.b16 %v1064
        %v1104 = vunpack.c.l.b16 %v1065
        %v1105 = vunpack.c.h.b16 %v1065
        %v1106 = vunpack.c.l.b16 %v1066
        %v1107 = vunpack.c.h.b16 %v1066
        %v1108 = vunpack.c.l.b16 %v1067
        %v1109 = vunpack.c.h.b16 %v1067
        %v1110 = vunpack.c.l.b16 %v1068
        %v1111 = vunpack.c.h.b16 %v1068
        %v1112 = vunpack.c.l.b16 %v1069
        %v1113 = vunpack.c.h.b16 %v1069
        %v1114 = vunpack.c.l.b16 %v1070
        %v1115 = vunpack.c.h.b16 %v1070
        %v1116 = vunpack.c.l.b16 %v1071
        %v1117 = vunpack.c.h.b16 %v1071
        %v1118 = vunpack.c.l.b16 %v1072
        %v1119 = vunpack.c.h.b16 %v1072
        %v1120 = vunpack.c.l.b16 %v1073
        %v1121 = vunpack.c.h.b16 %v1073
        %v1122 = vunpack.c.l.b16 %v1074
        %v1123 = vunpack.c.h.b16 %v1074
        %v1124 = vunpack.c.l.b16 %v1075
        %v1125 = vunpack.c.h.b16 %v1075
        %v1126 = vunpack.c.l.b16 %v1076
        %v1127 = vunpack.c.h.b16 %v1076
        %v1128 = vunpack.c.l.b16 %v1077
        %v1129 = vunpack.c.h.b16 %v1077
        %v1130 = vunpack.c.l.b16 %v1078
        %v1131 = vunpack.c.h.b16 %v1078
        %v1132 = vunpack.c.l.b16 %v1079
        %v1133 = vunpack.c.h.b16 %v1079
        %v1134 = vpack.c.b16 %v1104, %v1102
        %v1135 = vpack.c.b16 %v1105, %v1103
        %v1136 = vpack.c.b16 %v1108, %v1106
        %v1137 = vpack.c.b16 %v1109, %v1107
        %v1138 = vpack.c.b16 %v1112, %v1110
        %v1139 = vpack.c.b16 %v1113, %v1111
        %v1140 = vpack.c.b16 %v1116, %v1114
        %v1141 = vpack.c.b16 %v1117, %v1115
        %v1142 = vpack.c.b16 %v1120, %v1118
        %v1143 = vpack.c.b16 %v1121, %v1119
        %v1144 = vpack.c.b16 %v1124, %v1122
        %v1145 = vpack.c.b16 %v1125, %v1123
        %v1146 = vpack.c.b16 %v1128, %v1126
        %v1147 = vpack.c.b16 %v1129, %v1127
        %v1148 = vpack.c.b16 %v1132, %v1130
        %v1149 = vpack.c.b16 %v1133, %v1131
        %1166 = vmatpush.bf16.msra.mxu0 %v1148
        %1167 = vmatpush.bf16.msra.mxu0 %v1146
        %1168 = vmatpush.bf16.msra.mxu0 %v1144
        %1169 = vmatpush.bf16.msra.mxu0 %v1142
        %1170 = vmatpush.bf16.msra.mxu0 %v1140
        %1171 = vmatpush.bf16.msra.mxu0 %v1138
        %1172 = vmatpush.bf16.msra.mxu0 %v1136
        %1173 = vmatpush.bf16.msra.mxu0 %v1134
        %1174 = vmatmul.bf16.gmra.mxu0 %v1060
        %v1175 = vpop.f32.mrf.mxu0
        %v1176 = vadd.f32 %v1082, %v1175
        %v1177 = vpop.f32.mrf.mxu0
        %v1178 = vadd.f32 %v1082, %v1177
        %1179 = vmatmul.bf16.gmra.mxu0 %v1061
        %v1180 = vpop.f32.mrf.mxu0
        %v1181 = vadd.f32 %v1082, %v1180
        %v1182 = vpop.f32.mrf.mxu0
        %v1183 = vadd.f32 %v1082, %v1182
        %1184 = vmatmul.bf16.gmra.mxu0 %v1062
        %v1185 = vpop.f32.mrf.mxu0
        %v1186 = vadd.f32 %v1082, %v1185
        %v1187 = vpop.f32.mrf.mxu0
        %v1188 = vadd.f32 %v1082, %v1187
        %1189 = vmatmul.bf16.gmra.mxu0 %v1063
        %v1190 = vpop.f32.mrf.mxu0
        %v1191 = vadd.f32 %v1082, %v1190
        %v1192 = vpop.f32.mrf.mxu0
        %v1193 = vadd.f32 %v1082, %v1192
        %1194 = vdwg.mxu0
        %1195 = vmatpush.bf16.msra.mxu0 %v1149
        %1196 = vmatpush.bf16.msra.mxu0 %v1147
        %1197 = vmatpush.bf16.msra.mxu0 %v1145
        %1198 = vmatpush.bf16.msra.mxu0 %v1143
        %1199 = vmatpush.bf16.msra.mxu0 %v1141
        %1200 = vmatpush.bf16.msra.mxu0 %v1139
        %1201 = vmatpush.bf16.msra.mxu0 %v1137
        %1202 = vmatpush.bf16.msra.mxu0 %v1135
        %1203 = vmatmul.bf16.gmra.mxu0 %v1060
        %v1204 = vpop.f32.mrf.mxu0
        %v1205 = vadd.f32 %v1083, %v1204
        %v1206 = vpop.f32.mrf.mxu0
        %v1207 = vadd.f32 %v1083, %v1206
        %1208 = vmatmul.bf16.gmra.mxu0 %v1061
        %v1209 = vpop.f32.mrf.mxu0
        %v1210 = vadd.f32 %v1083, %v1209
        %v1211 = vpop.f32.mrf.mxu0
        %v1212 = vadd.f32 %v1083, %v1211
        %1213 = vmatmul.bf16.gmra.mxu0 %v1062
        %v1214 = vpop.f32.mrf.mxu0
        %v1215 = vadd.f32 %v1083, %v1214
        %v1216 = vpop.f32.mrf.mxu0
        %v1217 = vadd.f32 %v1083, %v1216
        %1218 = vmatmul.bf16.gmra.mxu0 %v1063
        %v1219 = vpop.f32.mrf.mxu0
        %v1220 = vadd.f32 %v1083, %v1219
        %v1221 = vpop.f32.mrf.mxu0
        %v1222 = vadd.f32 %v1083, %v1221
        %1223 = vdwg.mxu0
        %v1224 = vmax.f32 %v1176, 0.0
        %v1225 = vmax.f32 %v1205, 0.0
        %v1226 = vmax.f32 %v1178, 0.0
        %v1227 = vmax.f32 %v1207, 0.0
        %v1228 = vmax.f32 %v1181, 0.0
        %v1229 = vmax.f32 %v1210, 0.0
        %v1230 = vmax.f32 %v1183, 0.0
        %v1231 = vmax.f32 %v1212, 0.0
        %v1232 = vmax.f32 %v1186, 0.0
        %v1233 = vmax.f32 %v1215, 0.0
        %v1234 = vmax.f32 %v1188, 0.0
        %v1235 = vmax.f32 %v1217, 0.0
        %v1236 = vmax.f32 %v1191, 0.0
        %v1237 = vmax.f32 %v1220, 0.0
        %v1238 = vmax.f32 %v1193, 0.0
        %v1239 = vmax.f32 %v1222, 0.0
        %v1240 = vpack.c.bf16 %v1226, %v1224
        %v1241 = vpack.c.bf16 %v1227, %v1225
        %v1242 = vpack.c.bf16 %v1230, %v1228
        %v1243 = vpack.c.bf16 %v1231, %v1229
        %v1244 = vpack.c.bf16 %v1234, %v1232
        %v1245 = vpack.c.bf16 %v1235, %v1233
        %v1246 = vpack.c.bf16 %v1238, %v1236
        %v1247 = vpack.c.bf16 %v1239, %v1237
        %v1248 = vld [vmem:[%s656] sm:$0xf]
        %v1249 = vld [vmem:[%s656 + $0x4] sm:$0xf]
        %v1250 = vld [vmem:[%s656 + $0x8] sm:$0xf]
        %v1251 = vld [vmem:[%s656 + $0xc] sm:$0xf]
        %v1252 = vld [vmem:[%s656 + $0x10] sm:$0xf]
        %v1253 = vld [vmem:[%s656 + $0x14] sm:$0xf]
        %v1254 = vld [vmem:[%s656 + $0x18] sm:$0xf]
        %v1255 = vld [vmem:[%s656 + $0x1c] sm:$0xf]
        %v1256 = vld [vmem:[%s656 + $0x20] sm:$0xf]
        %v1257 = vld [vmem:[%s656 + $0x24] sm:$0xf]
        %v1258 = vld [vmem:[%s656 + $0x28] sm:$0xf]
        %v1259 = vld [vmem:[%s656 + $0x2c] sm:$0xf]
        %v1260 = vld [vmem:[%s656 + $0x30] sm:$0xf]
        %v1261 = vld [vmem:[%s656 + $0x34] sm:$0xf]
        %v1262 = vld [vmem:[%s656 + $0x38] sm:$0xf]
        %v1263 = vld [vmem:[%s656 + $0x3c] sm:$0xf]
        %v1264 = vld [vmem:[%s656 + $0x40] sm:$0xf]
        %v1265 = vld [vmem:[%s656 + $0x44] sm:$0xf]
        %v1266 = vld [vmem:[%s656 + $0x48] sm:$0xf]
        %v1267 = vld [vmem:[%s656 + $0x4c] sm:$0xf]
        %v1268 = vld [vmem:[%s656 + $0x50] sm:$0xf]
        %v1269 = vld [vmem:[%s656 + $0x54] sm:$0xf]
        %v1270 = vld [vmem:[%s656 + $0x58] sm:$0xf]
        %v1271 = vld [vmem:[%s656 + $0x5c] sm:$0xf]
        %v1272 = vld [vmem:[%s656 + $0x60] sm:$0xf]
        %v1273 = vld [vmem:[%s656 + $0x64] sm:$0xf]
        %v1274 = vld [vmem:[%s656 + $0x68] sm:$0xf]
        %v1275 = vld [vmem:[%s656 + $0x6c] sm:$0xf]
        %v1276 = vld [vmem:[%s656 + $0x70] sm:$0xf]
        %v1277 = vld [vmem:[%s656 + $0x74] sm:$0xf]
        %v1278 = vld [vmem:[%s656 + $0x78] sm:$0xf]
        %v1279 = vld [vmem:[%s656 + $0x7c] sm:$0xf]
        %v1280 = vld [vmem:[%s659] sm:$0x1]
        %v1282 = vperm.slane %v1280, 0
        %v1316 = vunpack.c.l.b16 %v1248
        %v1317 = vunpack.c.l.b16 %v1249
        %v1318 = vunpack.c.l.b16 %v1250
        %v1319 = vunpack.c.l.b16 %v1251
        %v1320 = vunpack.c.l.b16 %v1252
        %v1321 = vunpack.c.l.b16 %v1253
        %v1322 = vunpack.c.l.b16 %v1254
        %v1323 = vunpack.c.l.b16 %v1255
        %v1324 = vunpack.c.l.b16 %v1256
        %v1325 = vunpack.c.l.b16 %v1257
        %v1326 = vunpack.c.l.b16 %v1258
        %v1327 = vunpack.c.l.b16 %v1259
        %v1328 = vunpack.c.l.b16 %v1260
        %v1329 = vunpack.c.l.b16 %v1261
        %v1330 = vunpack.c.l.b16 %v1262
        %v1331 = vunpack.c.l.b16 %v1263
        %v1332 = vunpack.c.l.b16 %v1264
        %v1333 = vunpack.c.l.b16 %v1265
        %v1334 = vunpack.c.l.b16 %v1266
        %v1335 = vunpack.c.l.b16 %v1267
        %v1336 = vunpack.c.l.b16 %v1268
        %v1337 = vunpack.c.l.b16 %v1269
        %v1338 = vunpack.c.l.b16 %v1270
        %v1339 = vunpack.c.l.b16 %v1271
        %v1340 = vunpack.c.l.b16 %v1272
        %v1341 = vunpack.c.l.b16 %v1273
        %v1342 = vunpack.c.l.b16 %v1274
        %v1343 = vunpack.c.l.b16 %v1275
        %v1344 = vunpack.c.l.b16 %v1276
        %v1345 = vunpack.c.l.b16 %v1277
        %v1346 = vunpack.c.l.b16 %v1278
        %v1347 = vunpack.c.l.b16 %v1279
        %v1348 = vpack.c.b16 %v1317, %v1316
        %v1349 = vpack.c.b16 %v1319, %v1318
        %v1350 = vpack.c.b16 %v1321, %v1320
        %v1351 = vpack.c.b16 %v1323, %v1322
        %v1352 = vpack.c.b16 %v1325, %v1324
        %v1353 = vpack.c.b16 %v1327, %v1326
        %v1354 = vpack.c.b16 %v1329, %v1328
        %v1355 = vpack.c.b16 %v1331, %v1330
        %v1356 = vpack.c.b16 %v1333, %v1332
        %v1357 = vpack.c.b16 %v1335, %v1334
        %v1358 = vpack.c.b16 %v1337, %v1336
        %v1359 = vpack.c.b16 %v1339, %v1338
        %v1360 = vpack.c.b16 %v1341, %v1340
        %v1361 = vpack.c.b16 %v1343, %v1342
        %v1362 = vpack.c.b16 %v1345, %v1344
        %v1363 = vpack.c.b16 %v1347, %v1346
        %1380 = vmatpush.bf16.msra.mxu0 %v1355
        %1381 = vmatpush.bf16.msra.mxu0 %v1354
        %1382 = vmatpush.bf16.msra.mxu0 %v1353
        %1383 = vmatpush.bf16.msra.mxu0 %v1352
        %1384 = vmatpush.bf16.msra.mxu0 %v1351
        %1385 = vmatpush.bf16.msra.mxu0 %v1350
        %1386 = vmatpush.bf16.msra.mxu0 %v1349
        %1387 = vmatpush.bf16.msra.mxu0 %v1348
        %1388 = vmatmul.bf16.gmra.mxu0 %v1240
        %v1389 = vpop.f32.mrf.mxu0
        %v1390 = vadd.f32 %v1282, %v1389
        %v1391 = vpop.f32.mrf.mxu0
        %v1392 = vadd.f32 %v1282, %v1391
        %1393 = vmatmul.bf16.gmra.mxu0 %v1242
        %v1394 = vpop.f32.mrf.mxu0
        %v1395 = vadd.f32 %v1282, %v1394
        %v1396 = vpop.f32.mrf.mxu0
        %v1397 = vadd.f32 %v1282, %v1396
        %1398 = vmatmul.bf16.gmra.mxu0 %v1244
        %v1399 = vpop.f32.mrf.mxu0
        %v1400 = vadd.f32 %v1282, %v1399
        %v1401 = vpop.f32.mrf.mxu0
        %v1402 = vadd.f32 %v1282, %v1401
        %1403 = vmatmul.bf16.gmra.mxu0 %v1246
        %v1404 = vpop.f32.mrf.mxu0
        %v1405 = vadd.f32 %v1282, %v1404
        %v1406 = vpop.f32.mrf.mxu0
        %v1407 = vadd.f32 %v1282, %v1406
        %1408 = vdwg.mxu0
        %1409 = vmatpush.bf16.msra.mxu0 %v1363
        %1410 = vmatpush.bf16.msra.mxu0 %v1362
        %1411 = vmatpush.bf16.msra.mxu0 %v1361
        %1412 = vmatpush.bf16.msra.mxu0 %v1360
        %1413 = vmatpush.bf16.msra.mxu0 %v1359
        %1414 = vmatpush.bf16.msra.mxu0 %v1358
        %1415 = vmatpush.bf16.msra.mxu0 %v1357
        %1416 = vmatpush.bf16.msra.mxu0 %v1356
        %1417 = vmatmul.bf16.gmra.mxu0 %v1241
        %v1418 = vpop.f32.mrf.mxu0
        %v1419 = vadd.f32 %v1390, %v1418
        %v1420 = vpop.f32.mrf.mxu0
        %v1421 = vadd.f32 %v1392, %v1420
        %1422 = vmatmul.bf16.gmra.mxu0 %v1243
        %v1423 = vpop.f32.mrf.mxu0
        %v1424 = vadd.f32 %v1395, %v1423
        %v1425 = vpop.f32.mrf.mxu0
        %v1426 = vadd.f32 %v1397, %v1425
        %1427 = vmatmul.bf16.gmra.mxu0 %v1245
        %v1428 = vpop.f32.mrf.mxu0
        %v1429 = vadd.f32 %v1400, %v1428
        %v1430 = vpop.f32.mrf.mxu0
        %v1431 = vadd.f32 %v1402, %v1430
        %1432 = vmatmul.bf16.gmra.mxu0 %v1247
        %v1433 = vpop.f32.mrf.mxu0
        %v1434 = vadd.f32 %v1405, %v1433
        %v1435 = vpop.f32.mrf.mxu0
        %v1436 = vadd.f32 %v1407, %v1435
        %1437 = vdwg.mxu0
        %1438 = vst [vmem:[#allocation2] sm:$0xff] %v1419
        %1439 = vst [vmem:[#allocation2 + $0x8] sm:$0xff] %v1421
        %1440 = vst [vmem:[#allocation2 + $0x10] sm:$0xff] %v1424
        %1441 = vst [vmem:[#allocation2 + $0x18] sm:$0xff] %v1426
        %1442 = vst [vmem:[#allocation2 + $0x20] sm:$0xff] %v1429
        %1443 = vst [vmem:[#allocation2 + $0x28] sm:$0xff] %v1431
        %1444 = vst [vmem:[#allocation2 + $0x30] sm:$0xff] %v1434
        %1445 = vst [vmem:[#allocation2 + $0x38] sm:$0xff] %v1436
        %p1446 = scmp.ne.s32.totalorder %s29, 4
        // Predicated region
        $region93: #{gnn_forward.1} parent=87 // pred_check
          %p1447 = pneg %p1446
        $region94: #{gnn_forward.1} parent=87 // pred_check_branch
          %1449 = sbr.rel (%p1447) target = $region96
        $region95: #{gnn_forward.1} parent=87 // pred_region
          %v1450 = vld [vmem:[#allocation2] sm:$0xff]
          %v1451 = vld [vmem:[#allocation2 + $0x8] sm:$0xff]
          %v1452 = vld [vmem:[#allocation2 + $0x10] sm:$0xff]
          %v1453 = vld [vmem:[#allocation2 + $0x18] sm:$0xff]
          %v1454 = vld [vmem:[#allocation2 + $0x20] sm:$0xff]
          %v1455 = vld [vmem:[#allocation2 + $0x28] sm:$0xff]
          %v1456 = vld [vmem:[#allocation2 + $0x30] sm:$0xff]
          %v1457 = vld [vmem:[#allocation2 + $0x38] sm:$0xff]
          %v1458 = vmax.f32 %v1450, 0.0
          %v1459 = vmax.f32 %v1451, 0.0
          %v1460 = vmax.f32 %v1452, 0.0
          %v1461 = vmax.f32 %v1453, 0.0
          %v1462 = vmax.f32 %v1454, 0.0
          %v1463 = vmax.f32 %v1455, 0.0
          %v1464 = vmax.f32 %v1456, 0.0
          %v1465 = vmax.f32 %v1457, 0.0
          %1466 = vst [vmem:[#allocation2] sm:$0xff] %v1458
          %1467 = vst [vmem:[#allocation2 + $0x8] sm:$0xff] %v1459
          %1468 = vst [vmem:[#allocation2 + $0x10] sm:$0xff] %v1460
          %1469 = vst [vmem:[#allocation2 + $0x18] sm:$0xff] %v1461
          %1470 = vst [vmem:[#allocation2 + $0x20] sm:$0xff] %v1462
          %1471 = vst [vmem:[#allocation2 + $0x28] sm:$0xff] %v1463
          %1472 = vst [vmem:[#allocation2 + $0x30] sm:$0xff] %v1464
          %1473 = vst [vmem:[#allocation2 + $0x38] sm:$0xff] %v1465
          %v1474 = vld [vmem:[%s4] sm:$0x3]
          %v1475 = vld [vmem:[#allocation3] sm:$0xf]
          %v1477 = vsel %vm893, %v1474, 0
          %1479 = vmatpush.bf16.msra.mxu0 0
          %1480 = vmatpush.bf16.msra.mxu0 0
          %1481 = vmatpush.bf16.msra.mxu0 0
          %1482 = vmatpush.bf16.msra.mxu0 0
          %1483 = vmatpush.bf16.msra.mxu0 %v804
          %1484 = vmatpush.bf16.msra.mxu0 %v803
          %1485 = vmatpush.bf16.msra.mxu0 %v802
          %1486 = vmatpush.bf16.msra.mxu0 %v801
          %1487 = vmatmul.bf16.gmra.mxu0 %v1477
          %v1488 = vpop.f32.mrf.mxu0
          %v1489 = vadd.f32 %v1475, %v1488
          %v1490 = vpop.f32.mrf.mxu0
          %1491 = vdwg.mxu0
          %v1492 = vpack.c.bf16 %v1489, %v1489
          %v1493 = vld [vmem:[%s664] sm:$0xff]
          %v1494 = vld [vmem:[%s664 + $0x8] sm:$0xff]
          %v1495 = vld [vmem:[%s664 + $0x10] sm:$0xff]
          %v1496 = vld [vmem:[%s664 + $0x18] sm:$0xff]
          %v1497 = vld [vmem:[%s664 + $0x20] sm:$0xff]
          %v1498 = vld [vmem:[%s664 + $0x28] sm:$0xff]
          %v1499 = vld [vmem:[%s664 + $0x30] sm:$0xff]
          %v1500 = vld [vmem:[%s664 + $0x38] sm:$0xff]
          %v1501 = vld [vmem:[%s664 + $0x40] sm:$0xff]
          %v1502 = vld [vmem:[%s664 + $0x48] sm:$0xff]
          %v1503 = vld [vmem:[%s664 + $0x50] sm:$0xff]
          %v1504 = vld [vmem:[%s664 + $0x58] sm:$0xff]
          %v1505 = vld [vmem:[%s664 + $0x60] sm:$0xff]
          %v1506 = vld [vmem:[%s664 + $0x68] sm:$0xff]
          %v1507 = vld [vmem:[%s664 + $0x70] sm:$0xff]
          %v1508 = vld [vmem:[%s664 + $0x78] sm:$0xff]
          %v1509 = vld [vmem:[%s668] sm:$0x3]
          %v1511 = vperm.slane %v1509, 0
          %v1512 = vperm.slane %v1509, 1
          %v1531 = vunpack.c.l.b16 %v1493
          %v1532 = vunpack.c.h.b16 %v1493
          %v1533 = vunpack.c.l.b16 %v1494
          %v1534 = vunpack.c.h.b16 %v1494
          %v1535 = vunpack.c.l.b16 %v1495
          %v1536 = vunpack.c.h.b16 %v1495
          %v1537 = vunpack.c.l.b16 %v1496
          %v1538 = vunpack.c.h.b16 %v1496
          %v1539 = vunpack.c.l.b16 %v1497
          %v1540 = vunpack.c.h.b16 %v1497
          %v1541 = vunpack.c.l.b16 %v1498
          %v1542 = vunpack.c.h.b16 %v1498
          %v1543 = vunpack.c.l.b16 %v1499
          %v1544 = vunpack.c.h.b16 %v1499
          %v1545 = vunpack.c.l.b16 %v1500
          %v1546 = vunpack.c.h.b16 %v1500
          %v1547 = vunpack.c.l.b16 %v1501
          %v1548 = vunpack.c.h.b16 %v1501
          %v1549 = vunpack.c.l.b16 %v1502
          %v1550 = vunpack.c.h.b16 %v1502
          %v1551 = vunpack.c.l.b16 %v1503
          %v1552 = vunpack.c.h.b16 %v1503
          %v1553 = vunpack.c.l.b16 %v1504
          %v1554 = vunpack.c.h.b16 %v1504
          %v1555 = vunpack.c.l.b16 %v1505
          %v1556 = vunpack.c.h.b16 %v1505
          %v1557 = vunpack.c.l.b16 %v1506
          %v1558 = vunpack.c.h.b16 %v1506
          %v1559 = vunpack.c.l.b16 %v1507
          %v1560 = vunpack.c.h.b16 %v1507
          %v1561 = vunpack.c.l.b16 %v1508
          %v1562 = vunpack.c.h.b16 %v1508
          %v1563 = vpack.c.b16 %v1533, %v1531
          %v1564 = vpack.c.b16 %v1534, %v1532
          %v1565 = vpack.c.b16 %v1537, %v1535
          %v1566 = vpack.c.b16 %v1538, %v1536
          %v1567 = vpack.c.b16 %v1541, %v1539
          %v1568 = vpack.c.b16 %v1542, %v1540
          %v1569 = vpack.c.b16 %v1545, %v1543
          %v1570 = vpack.c.b16 %v1546, %v1544
          %v1571 = vpack.c.b16 %v1549, %v1547
          %v1572 = vpack.c.b16 %v1550, %v1548
          %v1573 = vpack.c.b16 %v1553, %v1551
          %v1574 = vpack.c.b16 %v1554, %v1552
          %v1575 = vpack.c.b16 %v1557, %v1555
          %v1576 = vpack.c.b16 %v1558, %v1556
          %v1577 = vpack.c.b16 %v1561, %v1559
          %v1578 = vpack.c.b16 %v1562, %v1560
          %1595 = vmatpush.bf16.msra.mxu0 %v1577
          %1596 = vmatpush.bf16.msra.mxu0 %v1575
          %1597 = vmatpush.bf16.msra.mxu0 %v1573
          %1598 = vmatpush.bf16.msra.mxu0 %v1571
          %1599 = vmatpush.bf16.msra.mxu0 %v1569
          %1600 = vmatpush.bf16.msra.mxu0 %v1567
          %1601 = vmatpush.bf16.msra.mxu0 %v1565
          %1602 = vmatpush.bf16.msra.mxu0 %v1563
          %1603 = vmatmul.bf16.gmra.mxu0 %v1492
          %v1604 = vpop.f32.mrf.mxu0
          %v1605 = vadd.f32 %v1511, %v1604
          %v1606 = vpop.f32.mrf.mxu0
          %1607 = vdwg.mxu0
          %1608 = vmatpush.bf16.msra.mxu0 %v1578
          %1609 = vmatpush.bf16.msra.mxu0 %v1576
          %1610 = vmatpush.bf16.msra.mxu0 %v1574
          %1611 = vmatpush.bf16.msra.mxu0 %v1572
          %1612 = vmatpush.bf16.msra.mxu0 %v1570
          %1613 = vmatpush.bf16.msra.mxu0 %v1568
          %1614 = vmatpush.bf16.msra.mxu0 %v1566
          %1615 = vmatpush.bf16.msra.mxu0 %v1564
          %1616 = vmatmul.bf16.gmra.mxu0 %v1492
          %v1617 = vpop.f32.mrf.mxu0
          %v1618 = vadd.f32 %v1512, %v1617
          %v1619 = vpop.f32.mrf.mxu0
          %1620 = vdwg.mxu0
          %v1621 = vmax.f32 %v1605, 0.0
          %v1622 = vmax.f32 %v1618, 0.0
          %v1623 = vpack.c.bf16 %v1621, %v1621
          %v1624 = vpack.c.bf16 %v1622, %v1622
          %v1625 = vld [vmem:[%s673] sm:$0xf]
          %v1626 = vld [vmem:[%s673 + $0x4] sm:$0xf]
          %v1627 = vld [vmem:[%s673 + $0x8] sm:$0xf]
          %v1628 = vld [vmem:[%s673 + $0xc] sm:$0xf]
          %v1629 = vld [vmem:[%s673 + $0x10] sm:$0xf]
          %v1630 = vld [vmem:[%s673 + $0x14] sm:$0xf]
          %v1631 = vld [vmem:[%s673 + $0x18] sm:$0xf]
          %v1632 = vld [vmem:[%s673 + $0x1c] sm:$0xf]
          %v1633 = vld [vmem:[%s673 + $0x20] sm:$0xf]
          %v1634 = vld [vmem:[%s673 + $0x24] sm:$0xf]
          %v1635 = vld [vmem:[%s673 + $0x28] sm:$0xf]
          %v1636 = vld [vmem:[%s673 + $0x2c] sm:$0xf]
          %v1637 = vld [vmem:[%s673 + $0x30] sm:$0xf]
          %v1638 = vld [vmem:[%s673 + $0x34] sm:$0xf]
          %v1639 = vld [vmem:[%s673 + $0x38] sm:$0xf]
          %v1640 = vld [vmem:[%s673 + $0x3c] sm:$0xf]
          %v1641 = vld [vmem:[%s673 + $0x40] sm:$0xf]
          %v1642 = vld [vmem:[%s673 + $0x44] sm:$0xf]
          %v1643 = vld [vmem:[%s673 + $0x48] sm:$0xf]
          %v1644 = vld [vmem:[%s673 + $0x4c] sm:$0xf]
          %v1645 = vld [vmem:[%s673 + $0x50] sm:$0xf]
          %v1646 = vld [vmem:[%s673 + $0x54] sm:$0xf]
          %v1647 = vld [vmem:[%s673 + $0x58] sm:$0xf]
          %v1648 = vld [vmem:[%s673 + $0x5c] sm:$0xf]
          %v1649 = vld [vmem:[%s673 + $0x60] sm:$0xf]
          %v1650 = vld [vmem:[%s673 + $0x64] sm:$0xf]
          %v1651 = vld [vmem:[%s673 + $0x68] sm:$0xf]
          %v1652 = vld [vmem:[%s673 + $0x6c] sm:$0xf]
          %v1653 = vld [vmem:[%s673 + $0x70] sm:$0xf]
          %v1654 = vld [vmem:[%s673 + $0x74] sm:$0xf]
          %v1655 = vld [vmem:[%s673 + $0x78] sm:$0xf]
          %v1656 = vld [vmem:[%s673 + $0x7c] sm:$0xf]
          %v1657 = vld [vmem:[%s676] sm:$0x1]
          %v1659 = vperm.slane %v1657, 0
          %v1693 = vunpack.c.l.b16 %v1625
          %v1694 = vunpack.c.l.b16 %v1626
          %v1695 = vunpack.c.l.b16 %v1627
          %v1696 = vunpack.c.l.b16 %v1628
          %v1697 = vunpack.c.l.b16 %v1629
          %v1698 = vunpack.c.l.b16 %v1630
          %v1699 = vunpack.c.l.b16 %v1631
          %v1700 = vunpack.c.l.b16 %v1632
          %v1701 = vunpack.c.l.b16 %v1633
          %v1702 = vunpack.c.l.b16 %v1634
          %v1703 = vunpack.c.l.b16 %v1635
          %v1704 = vunpack.c.l.b16 %v1636
          %v1705 = vunpack.c.l.b16 %v1637
          %v1706 = vunpack.c.l.b16 %v1638
          %v1707 = vunpack.c.l.b16 %v1639
          %v1708 = vunpack.c.l.b16 %v1640
          %v1709 = vunpack.c.l.b16 %v1641
          %v1710 = vunpack.c.l.b16 %v1642
          %v1711 = vunpack.c.l.b16 %v1643
          %v1712 = vunpack.c.l.b16 %v1644
          %v1713 = vunpack.c.l.b16 %v1645
          %v1714 = vunpack.c.l.b16 %v1646
          %v1715 = vunpack.c.l.b16 %v1647
          %v1716 = vunpack.c.l.b16 %v1648
          %v1717 = vunpack.c.l.b16 %v1649
          %v1718 = vunpack.c.l.b16 %v1650
          %v1719 = vunpack.c.l.b16 %v1651
          %v1720 = vunpack.c.l.b16 %v1652
          %v1721 = vunpack.c.l.b16 %v1653
          %v1722 = vunpack.c.l.b16 %v1654
          %v1723 = vunpack.c.l.b16 %v1655
          %v1724 = vunpack.c.l.b16 %v1656
          %v1725 = vpack.c.b16 %v1694, %v1693
          %v1726 = vpack.c.b16 %v1696, %v1695
          %v1727 = vpack.c.b16 %v1698, %v1697
          %v1728 = vpack.c.b16 %v1700, %v1699
          %v1729 = vpack.c.b16 %v1702, %v1701
          %v1730 = vpack.c.b16 %v1704, %v1703
          %v1731 = vpack.c.b16 %v1706, %v1705
          %v1732 = vpack.c.b16 %v1708, %v1707
          %v1733 = vpack.c.b16 %v1710, %v1709
          %v1734 = vpack.c.b16 %v1712, %v1711
          %v1735 = vpack.c.b16 %v1714, %v1713
          %v1736 = vpack.c.b16 %v1716, %v1715
          %v1737 = vpack.c.b16 %v1718, %v1717
          %v1738 = vpack.c.b16 %v1720, %v1719
          %v1739 = vpack.c.b16 %v1722, %v1721
          %v1740 = vpack.c.b16 %v1724, %v1723
          %1757 = vmatpush.bf16.msra.mxu0 %v1732
          %1758 = vmatpush.bf16.msra.mxu0 %v1731
          %1759 = vmatpush.bf16.msra.mxu0 %v1730
          %1760 = vmatpush.bf16.msra.mxu0 %v1729
          %1761 = vmatpush.bf16.msra.mxu0 %v1728
          %1762 = vmatpush.bf16.msra.mxu0 %v1727
          %1763 = vmatpush.bf16.msra.mxu0 %v1726
          %1764 = vmatpush.bf16.msra.mxu0 %v1725
          %1765 = vmatmul.bf16.gmra.mxu0 %v1623
          %v1766 = vpop.f32.mrf.mxu0
          %v1767 = vadd.f32 %v1659, %v1766
          %v1768 = vpop.f32.mrf.mxu0
          %1769 = vdwg.mxu0
          %1770 = vmatpush.bf16.msra.mxu0 %v1740
          %1771 = vmatpush.bf16.msra.mxu0 %v1739
          %1772 = vmatpush.bf16.msra.mxu0 %v1738
          %1773 = vmatpush.bf16.msra.mxu0 %v1737
          %1774 = vmatpush.bf16.msra.mxu0 %v1736
          %1775 = vmatpush.bf16.msra.mxu0 %v1735
          %1776 = vmatpush.bf16.msra.mxu0 %v1734
          %1777 = vmatpush.bf16.msra.mxu0 %v1733
          %1778 = vmatmul.bf16.gmra.mxu0 %v1624
          %v1779 = vpop.f32.mrf.mxu0
          %v1780 = vadd.f32 %v1767, %v1779
          %v1781 = vpop.f32.mrf.mxu0
          %1782 = vdwg.mxu0
          %v1783 = vmax.f32 %v1780, 0.0
          %1784 = vst [vmem:[#allocation3] sm:$0xf] %v1783
        $region96: #{gnn_forward.1} parent=87 // pred_fallthru
          _
        %p1785 = scmp.eq.s32.totalorder %s29, 4
        // Predicated region
        $region97: #{gnn_forward.1} parent=87 // pred_check
          %p1786 = pneg %p1785
        $region98: #{gnn_forward.1} parent=87 // pred_check_branch
          %1788 = sbr.rel (%p1786) target = $region100
        $region99: #{gnn_forward.1} parent=87 // pred_region
          %v1789 = vld [vmem:[%s4] sm:$0x3]
          %v1790 = vld [vmem:[#allocation2] sm:$0xff]
          %v1791 = vld [vmem:[#allocation2 + $0x8] sm:$0xff]
          %v1792 = vld [vmem:[#allocation2 + $0x10] sm:$0xff]
          %v1793 = vld [vmem:[#allocation2 + $0x18] sm:$0xff]
          %v1794 = vld [vmem:[#allocation2 + $0x20] sm:$0xff]
          %v1795 = vld [vmem:[#allocation2 + $0x28] sm:$0xff]
          %v1796 = vld [vmem:[#allocation2 + $0x30] sm:$0xff]
          %v1797 = vld [vmem:[#allocation2 + $0x38] sm:$0xff]
          %v1798 = vpack.c.bf16 %v1791, %v1790
          %v1799 = vpack.c.bf16 %v1793, %v1792
          %v1800 = vpack.c.bf16 %v1795, %v1794
          %v1801 = vpack.c.bf16 %v1797, %v1796
          %v1803 = vsel %vm893, %v1789, 0
          %1805 = vmatpush.bf16.msra.mxu0 0
          %1806 = vmatpush.bf16.msra.mxu0 0
          %1807 = vmatpush.bf16.msra.mxu0 0
          %1808 = vmatpush.bf16.msra.mxu0 0
          %1809 = vmatpush.bf16.msra.mxu0 %v1801
          %1810 = vmatpush.bf16.msra.mxu0 %v1800
          %1811 = vmatpush.bf16.msra.mxu0 %v1799
          %1812 = vmatpush.bf16.msra.mxu0 %v1798
          %1813 = vmatmul.bf16.gmra.mxu0 %v1803
          %v1814 = vpop.f32.mrf.mxu0
          %v1815 = vadd.f32 0.0, %v1814
          %v1816 = vpop.f32.mrf.mxu0
          %1817 = vdwg.mxu0
          %v1818 = vld [vmem:[%s5] sm:$0xf]
          %1820 = vset.pattern.permute.xlu0 0
          %1821 = vperm.xlu0 %1820, %v1818
          %v1822 = vpop.permute.xlu0 %1821
          %v1824 = vmul.f32 %v1815, %v1822
          %v1825 = vpack.c.bf16 %v1824, %v1824
          %v1826 = vld [vmem:[%s15] sm:$0xf]
          %v1827 = vld [vmem:[%s15 + $0x4] sm:$0xf]
          %v1828 = vld [vmem:[%s15 + $0x8] sm:$0xf]
          %v1829 = vld [vmem:[%s15 + $0xc] sm:$0xf]
          %v1830 = vld [vmem:[%s15 + $0x10] sm:$0xf]
          %v1831 = vld [vmem:[%s15 + $0x14] sm:$0xf]
          %v1832 = vld [vmem:[%s15 + $0x18] sm:$0xf]
          %v1833 = vld [vmem:[%s15 + $0x1c] sm:$0xf]
          %v1834 = vld [vmem:[%s15 + $0x20] sm:$0xf]
          %v1835 = vld [vmem:[%s15 + $0x24] sm:$0xf]
          %v1836 = vld [vmem:[%s15 + $0x28] sm:$0xf]
          %v1837 = vld [vmem:[%s15 + $0x2c] sm:$0xf]
          %v1838 = vld [vmem:[%s15 + $0x30] sm:$0xf]
          %v1839 = vld [vmem:[%s15 + $0x34] sm:$0xf]
          %v1840 = vld [vmem:[%s15 + $0x38] sm:$0xf]
          %v1841 = vld [vmem:[%s15 + $0x3c] sm:$0xf]
          %v1842 = vld [vmem:[%s16] sm:$0x1]
          %v1844 = vperm.slane %v1842, 0
          %v1862 = vunpack.c.l.b16 %v1826
          %v1863 = vunpack.c.l.b16 %v1827
          %v1864 = vunpack.c.l.b16 %v1828
          %v1865 = vunpack.c.l.b16 %v1829
          %v1866 = vunpack.c.l.b16 %v1830
          %v1867 = vunpack.c.l.b16 %v1831
          %v1868 = vunpack.c.l.b16 %v1832
          %v1869 = vunpack.c.l.b16 %v1833
          %v1870 = vunpack.c.l.b16 %v1834
          %v1871 = vunpack.c.l.b16 %v1835
          %v1872 = vunpack.c.l.b16 %v1836
          %v1873 = vunpack.c.l.b16 %v1837
          %v1874 = vunpack.c.l.b16 %v1838
          %v1875 = vunpack.c.l.b16 %v1839
          %v1876 = vunpack.c.l.b16 %v1840
          %v1877 = vunpack.c.l.b16 %v1841
          %v1878 = vpack.c.b16 %v1863, %v1862
          %v1879 = vpack.c.b16 %v1865, %v1864
          %v1880 = vpack.c.b16 %v1867, %v1866
          %v1881 = vpack.c.b16 %v1869, %v1868
          %v1882 = vpack.c.b16 %v1871, %v1870
          %v1883 = vpack.c.b16 %v1873, %v1872
          %v1884 = vpack.c.b16 %v1875, %v1874
          %v1885 = vpack.c.b16 %v1877, %v1876
          %1894 = vmatpush.bf16.msra.mxu0 %v1885
          %1895 = vmatpush.bf16.msra.mxu0 %v1884
          %1896 = vmatpush.bf16.msra.mxu0 %v1883
          %1897 = vmatpush.bf16.msra.mxu0 %v1882
          %1898 = vmatpush.bf16.msra.mxu0 %v1881
          %1899 = vmatpush.bf16.msra.mxu0 %v1880
          %1900 = vmatpush.bf16.msra.mxu0 %v1879
          %1901 = vmatpush.bf16.msra.mxu0 %v1878
          %1902 = vmatmul.bf16.gmra.mxu0 %v1825
          %v1903 = vpop.f32.mrf.mxu0
          %v1904 = vadd.f32 %v1844, %v1903
          %v1905 = vpop.f32.mrf.mxu0
          %1906 = vdwg.mxu0
          %vm1907 = vcmask 60416
          %1908 = vst.msk [vmem:[#allocation4] sm:$0xf] %vm1907, %v1904
        $region100: #{gnn_forward.1} parent=87 // pred_fallthru
          _
        // Predicated region
        $region101: #{gnn_forward.1} parent=87 // pred_check
          %p1909 = pneg %p444
        $region102: #{gnn_forward.1} parent=87 // pred_check_branch
          %1911 = sbr.rel (%p1909) target = $region104
        $region103: #{gnn_forward.1} parent=87 // pred_region
          %1913 = vsyncadd [#allocation5], 0
          %s1915 = sshll.u32 [#allocation4], 4
          %s1916 = int_to_ptr.vmem [resolvable:$true] %s1915
          %s1917 = sshll.u32 %s17, 4
          %s1918 = int_to_ptr.hbm [resolvable:$true] %s1917
          %1920 = dma.vmem_to_hbm [thread:$0]  %s1916, 64, %s1918, [#allocation5]
        $region104: #{gnn_forward.1} parent=87 // pred_fallthru
          _
        // Predicated region
        $region105: #{gnn_forward.1} parent=87 // pred_check
          %p1921 = pneg %p444
        $region106: #{gnn_forward.1} parent=87 // pred_check_branch
          %1923 = sbr.rel (%p1921) target = $region108
        $region107: #{gnn_forward.1} parent=87 // pred_region
          %1925 = dma.done [#allocation5], 64
        $region108: #{gnn_forward.1} parent=87 // pred_fallthru
          _
      $region88: #{gnn_forward.1} parent=5 // pred_fallthru
        _
      %p1926 = scmp.le.s32.totalorder 2, %s24
      // Predicated region
      $region109: #{gnn_forward.1} parent=5 // pred_check
        %p1927 = pneg %p1926
      $region110: #{gnn_forward.1} parent=5 // pred_check_branch
        %1929 = sbr.rel (%p1927) target = $region112
      $region111: #{gnn_forward.1} parent=5 // pred_region
        %s1930 = ssub.s32 %s24, 2
      $region112: #{gnn_forward.1} parent=5 // pred_fallthru
        _
    $region6: #{gnn_forward.1} parent=1 // loop_footer
      %s28 = sadd.s32 1, %s24
    $region7: #{gnn_forward.1} parent=1 // loop_footer_branch
      %23 = sbr.rel target = $region3
    $region8: #{gnn_forward.1} parent=1 // loop_exit
      _
    %1931 = vsyncpa [#allocation5], 1
    %s1932 = scalar_lea.sflag [#allocation5], 1
    %1933 = vsyncpa %s1932, 1

</llo_original>
